<compile_context>
chip_gen: v6e
topology: v6e:2x2x1
jax: 0.10.0
libtpu: 0.0.40
codegen_flags: <defaults>
</compile_context>

<pallas_src>
import functools

import jax
import jax.numpy as jnp
from jax import lax
from jax.experimental import pallas as pl
from jax.experimental.pallas import tpu as pltpu


def _dwconv_kernel(x_ref, w_ref, b_ref, o_ref, acc_ref, *, H, W):
    # x_ref:   (1, H, W, TC)  unpadded input block (one batch, one channel tile)
    # w_ref:   (9, TC)        depthwise taps, row k = kh*3 + kw
    # b_ref:   (1, TC)        bias
    # o_ref:   (1, H, W, TC)
    # acc_ref: (H, W, TC)     f32 VMEM scratch accumulator
    TC = o_ref.shape[-1]

    # Accumulator starts at the bias (saves a separate full-tile add pass).
    bias = b_ref[0].astype(jnp.float32)                            # (TC,)
    acc_ref[...] = jnp.broadcast_to(bias[None, None, :], (H, W, TC))

    # out[h, w] = sum_{dh,dw in {-1,0,1}} w[dh+1, dw+1] * x[h+dh, w+dw]
    # with x == 0 outside the image ("same" padding), handled here by
    # restricting each tap to the rows/cols where the shifted read is valid.
    for dw in (-1, 0, 1):
        x_clo, x_chi = max(0, dw), W - max(0, -dw)
        o_clo, o_chi = max(0, -dw), W - max(0, dw)
        # Load the column-shifted slab once; reuse across the 3 row taps.
        xs = x_ref[0, :, x_clo:x_chi, :].astype(jnp.float32)       # (H, W-|dw|, TC)
        for dh in (-1, 0, 1):
            k = (dh + 1) * 3 + (dw + 1)
            tap = w_ref[k, :].astype(jnp.float32)[None, None, :]   # (1, 1, TC)
            x_rlo, x_rhi = max(0, dh), H - max(0, -dh)
            o_rlo, o_rhi = max(0, -dh), H - max(0, dh)
            acc_ref[o_rlo:o_rhi, o_clo:o_chi, :] += xs[x_rlo:x_rhi] * tap

    o_ref[0] = acc_ref[...].astype(o_ref.dtype)


def dwconv(x, weight, bias, H, W):
    """x: (B, N, C) with N == H*W; weight: (C, 1, 3, 3); bias: (C,).

    Returns (B, N, C), matching torch's DWConv.forward(x, H, W)."""
    B, N, C = x.shape
    assert N == H * W

    LANES = 128
    Cp = ((C + LANES - 1) // LANES) * LANES       # lane-dense channel count
    TC = LANES
    n_c = Cp // TC

    # glue: (B, N, C) -> NHWC; weight (C,1,3,3) -> (9, C); bias -> (1, C)
    x_nhwc = x.reshape(B, H, W, C)
    w9 = jnp.transpose(weight[:, 0, :, :], (1, 2, 0)).reshape(9, C)
    b2 = bias.reshape(1, C)
    if Cp != C:
        # Only pads when C is not already a multiple of 128 (e.g. the toy test).
        x_nhwc = jnp.pad(x_nhwc, ((0, 0), (0, 0), (0, 0), (0, Cp - C)))
        w9 = jnp.pad(w9, ((0, 0), (0, Cp - C)))
        b2 = jnp.pad(b2, ((0, 0), (0, Cp - C)))

    kernel = functools.partial(_dwconv_kernel, H=H, W=W)

    out_nhwc = pl.pallas_call(
        kernel,
        out_shape=jax.ShapeDtypeStruct((B, H, W, Cp), x.dtype),
        grid_spec=pltpu.PrefetchScalarGridSpec(
            num_scalar_prefetch=0,
            grid=(B, n_c),
            in_specs=[
                pl.BlockSpec((1, H, W, TC), lambda b, c: (b, 0, 0, c)),
                pl.BlockSpec((9, TC), lambda b, c: (0, c)),
                pl.BlockSpec((1, TC), lambda b, c: (0, c)),
            ],
            out_specs=pl.BlockSpec((1, H, W, TC), lambda b, c: (b, 0, 0, c)),
            scratch_shapes=[pltpu.VMEM((H, W, TC), jnp.float32)],
        ),
        compiler_params=pltpu.CompilerParams(
            dimension_semantics=("parallel", "parallel")),
    )(x_nhwc, w9, b2)

    if Cp != C:
        out_nhwc = out_nhwc[..., :C]
    return out_nhwc.reshape(B, N, C)


def _reference_dwconv(x, weight, bias, H, W):
    # Reference via lax.conv_general_dilated (depthwise = feature_group_count=C).
    B, N, C = x.shape
    x_nchw = jnp.transpose(x, (0, 2, 1)).reshape(B, C, H, W)
    y = lax.conv_general_dilated(
        x_nchw.astype(jnp.float32),
        weight.astype(jnp.float32),          # (C, 1, 3, 3) = (O, I/g, kh, kw)
        window_strides=(1, 1),
        padding=((1, 1), (1, 1)),
        feature_group_count=C,
        dimension_numbers=("NCHW", "OIHW", "NCHW"),
    )
    y = y + bias.astype(jnp.float32)[None, :, None, None]
    return jnp.transpose(y.reshape(B, C, N), (0, 2, 1)).astype(x.dtype)


if __name__ == "__main__":
    key = jax.random.PRNGKey(0)
    B, C, Hh, Ww = 2, 32, 16, 16          # small synthetic shapes (dim=C)
    N = Hh * Ww

    kx, kw, kb = jax.random.split(key, 3)
    x = jax.random.normal(kx, (B, N, C), dtype=jnp.float32)
    # deterministic parameter init (synthetic; not a checkpoint load)
    weight = jax.random.normal(kw, (C, 1, 3, 3), dtype=jnp.float32) * 0.1
    bias = jax.random.normal(kb, (C,), dtype=jnp.float32) * 0.1

    out = dwconv(x, weight, bias, Hh, Ww)
    out = jax.block_until_ready(out)

    ref = _reference_dwconv(x, weight, bias, Hh, Ww)
    assert out.shape == (B, N, C)
    assert jnp.allclose(out, ref, atol=1e-4, rtol=1e-4)

    print("KERNEL_OK")
</pallas_src>

<mosaic_0001>
module attributes {stable_mosaic.version = 11 : i64} {
  func.func @_dwconv_kernel(%arg0: i32, %arg1: i32, %arg2: memref<1x16x16x128xf32, #tpu.memory_space<vmem>>, %arg3: memref<9x128xf32, #tpu.memory_space<vmem>>, %arg4: memref<1x128xf32, #tpu.memory_space<vmem>>, %arg5: memref<1x16x16x128xf32, #tpu.memory_space<vmem>>, %arg6: memref<16x16x128xf32, #tpu.memory_space<vmem>>) attributes {dimension_semantics = [#tpu.dimension_semantics<parallel>, #tpu.dimension_semantics<parallel>], iteration_bounds = array<i64: 2, 1>, scalar_prefetch = 0 : i64, scratch_operands = 1 : i64, tpu.core_type = #tpu.core_type<tc>, window_params = [{transform_indices = @transform_0, window_bounds = array<i64: 1, 16, 16, 128>}, {transform_indices = @transform_1, window_bounds = array<i64: 9, 128>}, {transform_indices = @transform_2, window_bounds = array<i64: 1, 128>}, {transform_indices = @transform_3, window_bounds = array<i64: 1, 16, 16, 128>}]} {
    %c0 = arith.constant 0 : index
    %c0_0 = arith.constant 0 : index
    %0 = vector.load %arg4[%c0, %c0_0] : memref<1x128xf32, #tpu.memory_space<vmem>>, vector<1x128xf32>
    %1 = vector.shape_cast %0 : vector<1x128xf32> to vector<128xf32>
    %2 = vector.shape_cast %1 : vector<128xf32> to vector<1x1x128xf32>
    %3 = vector.shape_cast %2 : vector<1x1x128xf32> to vector<1x1x128xf32>
    %4 = vector.broadcast %3 : vector<1x1x128xf32> to vector<16x16x128xf32>
    %c0_1 = arith.constant 0 : index
    %c0_2 = arith.constant 0 : index
    %c0_3 = arith.constant 0 : index
    %5 = vector.load %arg6[%c0_1, %c0_2, %c0_3] : memref<16x16x128xf32, #tpu.memory_space<vmem>>, vector<16x16x128xf32>
    tpu.vector_store %arg6[%c0_1, %c0_2, %c0_3], %4 {strides = array<i32>} : memref<16x16x128xf32, #tpu.memory_space<vmem>>, vector<16x16x128xf32>,
    %c0_4 = arith.constant 0 : index
    %c0_5 = arith.constant 0 : index
    %c0_6 = arith.constant 0 : index
    %c0_7 = arith.constant 0 : index
    %6 = vector.load %arg2[%c0_4, %c0_5, %c0_6, %c0_7] : memref<1x16x16x128xf32, #tpu.memory_space<vmem>>, vector<1x16x15x128xf32>
    %7 = vector.shape_cast %6 : vector<1x16x15x128xf32> to vector<16x15x128xf32>
    %c0_8 = arith.constant 0 : index
    %c0_9 = arith.constant 0 : index
    %8 = vector.load %arg3[%c0_8, %c0_9] : memref<9x128xf32, #tpu.memory_space<vmem>>, vector<1x128xf32>
    %9 = vector.shape_cast %8 : vector<1x128xf32> to vector<128xf32>
    %10 = vector.shape_cast %9 : vector<128xf32> to vector<1x1x128xf32>
    %c1 = arith.constant 1 : index
    %c1_10 = arith.constant 1 : index
    %c0_11 = arith.constant 0 : index
    %11 = vector.load %arg6[%c1, %c1_10, %c0_11] : memref<16x16x128xf32, #tpu.memory_space<vmem>>, vector<15x15x128xf32>
    %12 = vector.extract_strided_slice %7 {offsets = [0, 0, 0], sizes = [15, 15, 128], strides = [1, 1, 1]} : vector<16x15x128xf32> to vector<15x15x128xf32>
    %13 = vector.broadcast %10 : vector<1x1x128xf32> to vector<15x15x128xf32>
    %14 = arith.mulf %12, %13 : vector<15x15x128xf32>
    %15 = arith.addf %11, %14 : vector<15x15x128xf32>
    %c1_12 = arith.constant 1 : index
    %c1_13 = arith.constant 1 : index
    %c0_14 = arith.constant 0 : index
    %16 = vector.load %arg6[%c1_12, %c1_13, %c0_14] : memref<16x16x128xf32, #tpu.memory_space<vmem>>, vector<15x15x128xf32>
    tpu.vector_store %arg6[%c1_12, %c1_13, %c0_14], %15 {strides = array<i32>} : memref<16x16x128xf32, #tpu.memory_space<vmem>>, vector<15x15x128xf32>,
    %c3 = arith.constant 3 : index
    %c0_15 = arith.constant 0 : index
    %17 = vector.load %arg3[%c3, %c0_15] : memref<9x128xf32, #tpu.memory_space<vmem>>, vector<1x128xf32>
    %18 = vector.shape_cast %17 : vector<1x128xf32> to vector<128xf32>
    %19 = vector.shape_cast %18 : vector<128xf32> to vector<1x1x128xf32>
    %c0_16 = arith.constant 0 : index
    %c1_17 = arith.constant 1 : index
    %c0_18 = arith.constant 0 : index
    %20 = vector.load %arg6[%c0_16, %c1_17, %c0_18] : memref<16x16x128xf32, #tpu.memory_space<vmem>>, vector<16x15x128xf32>
    %21 = vector.broadcast %19 : vector<1x1x128xf32> to vector<16x15x128xf32>
    %22 = arith.mulf %7, %21 : vector<16x15x128xf32>
    %23 = arith.addf %20, %22 : vector<16x15x128xf32>
    %c0_19 = arith.constant 0 : index
    %c1_20 = arith.constant 1 : index
    %c0_21 = arith.constant 0 : index
    %24 = vector.load %arg6[%c0_19, %c1_20, %c0_21] : memref<16x16x128xf32, #tpu.memory_space<vmem>>, vector<16x15x128xf32>
    tpu.vector_store %arg6[%c0_19, %c1_20, %c0_21], %23 {strides = array<i32>} : memref<16x16x128xf32, #tpu.memory_space<vmem>>, vector<16x15x128xf32>,
    %c6 = arith.constant 6 : index
    %c0_22 = arith.constant 0 : index
    %25 = vector.load %arg3[%c6, %c0_22] : memref<9x128xf32, #tpu.memory_space<vmem>>, vector<1x128xf32>
    %26 = vector.shape_cast %25 : vector<1x128xf32> to vector<128xf32>
    %27 = vector.shape_cast %26 : vector<128xf32> to vector<1x1x128xf32>
    %c0_23 = arith.constant 0 : index
    %c1_24 = arith.constant 1 : index
    %c0_25 = arith.constant 0 : index
    %28 = vector.load %arg6[%c0_23, %c1_24, %c0_25] : memref<16x16x128xf32, #tpu.memory_space<vmem>>, vector<15x15x128xf32>
    %29 = vector.extract_strided_slice %7 {offsets = [1, 0, 0], sizes = [15, 15, 128], strides = [1, 1, 1]} : vector<16x15x128xf32> to vector<15x15x128xf32>
    %30 = vector.broadcast %27 : vector<1x1x128xf32> to vector<15x15x128xf32>
    %31 = arith.mulf %29, %30 : vector<15x15x128xf32>
    %32 = arith.addf %28, %31 : vector<15x15x128xf32>
    %c0_26 = arith.constant 0 : index
    %c1_27 = arith.constant 1 : index
    %c0_28 = arith.constant 0 : index
    %33 = vector.load %arg6[%c0_26, %c1_27, %c0_28] : memref<16x16x128xf32, #tpu.memory_space<vmem>>, vector<15x15x128xf32>
    tpu.vector_store %arg6[%c0_26, %c1_27, %c0_28], %32 {strides = array<i32>} : memref<16x16x128xf32, #tpu.memory_space<vmem>>, vector<15x15x128xf32>,
    %c0_29 = arith.constant 0 : index
    %c0_30 = arith.constant 0 : index
    %c0_31 = arith.constant 0 : index
    %c0_32 = arith.constant 0 : index
    %34 = vector.load %arg2[%c0_29, %c0_30, %c0_31, %c0_32] : memref<1x16x16x128xf32, #tpu.memory_space<vmem>>, vector<1x16x16x128xf32>
    %35 = vector.shape_cast %34 : vector<1x16x16x128xf32> to vector<16x16x128xf32>
    %c1_33 = arith.constant 1 : index
    %c0_34 = arith.constant 0 : index
    %36 = vector.load %arg3[%c1_33, %c0_34] : memref<9x128xf32, #tpu.memory_space<vmem>>, vector<1x128xf32>
    %37 = vector.shape_cast %36 : vector<1x128xf32> to vector<128xf32>
    %38 = vector.shape_cast %37 : vector<128xf32> to vector<1x1x128xf32>
    %c1_35 = arith.constant 1 : index
    %c0_36 = arith.constant 0 : index
    %c0_37 = arith.constant 0 : index
    %39 = vector.load %arg6[%c1_35, %c0_36, %c0_37] : memref<16x16x128xf32, #tpu.memory_space<vmem>>, vector<15x16x128xf32>
    %40 = vector.extract_strided_slice %35 {offsets = [0, 0, 0], sizes = [15, 16, 128], strides = [1, 1, 1]} : vector<16x16x128xf32> to vector<15x16x128xf32>
    %41 = vector.broadcast %38 : vector<1x1x128xf32> to vector<15x16x128xf32>
    %42 = arith.mulf %40, %41 : vector<15x16x128xf32>
    %43 = arith.addf %39, %42 : vector<15x16x128xf32>
    %c1_38 = arith.constant 1 : index
    %c0_39 = arith.constant 0 : index
    %c0_40 = arith.constant 0 : index
    %44 = vector.load %arg6[%c1_38, %c0_39, %c0_40] : memref<16x16x128xf32, #tpu.memory_space<vmem>>, vector<15x16x128xf32>
    tpu.vector_store %arg6[%c1_38, %c0_39, %c0_40], %43 {strides = array<i32>} : memref<16x16x128xf32, #tpu.memory_space<vmem>>, vector<15x16x128xf32>,
    %c4 = arith.constant 4 : index
    %c0_41 = arith.constant 0 : index
    %45 = vector.load %arg3[%c4, %c0_41] : memref<9x128xf32, #tpu.memory_space<vmem>>, vector<1x128xf32>
    %46 = vector.shape_cast %45 : vector<1x128xf32> to vector<128xf32>
    %47 = vector.shape_cast %46 : vector<128xf32> to vector<1x1x128xf32>
    %c0_42 = arith.constant 0 : index
    %c0_43 = arith.constant 0 : index
    %c0_44 = arith.constant 0 : index
    %48 = vector.load %arg6[%c0_42, %c0_43, %c0_44] : memref<16x16x128xf32, #tpu.memory_space<vmem>>, vector<16x16x128xf32>
    %49 = vector.broadcast %47 : vector<1x1x128xf32> to vector<16x16x128xf32>
    %50 = arith.mulf %35, %49 : vector<16x16x128xf32>
    %51 = arith.addf %48, %50 : vector<16x16x128xf32>
    %c0_45 = arith.constant 0 : index
    %c0_46 = arith.constant 0 : index
    %c0_47 = arith.constant 0 : index
    %52 = vector.load %arg6[%c0_45, %c0_46, %c0_47] : memref<16x16x128xf32, #tpu.memory_space<vmem>>, vector<16x16x128xf32>
    tpu.vector_store %arg6[%c0_45, %c0_46, %c0_47], %51 {strides = array<i32>} : memref<16x16x128xf32, #tpu.memory_space<vmem>>, vector<16x16x128xf32>,
    %c7 = arith.constant 7 : index
    %c0_48 = arith.constant 0 : index
    %53 = vector.load %arg3[%c7, %c0_48] : memref<9x128xf32, #tpu.memory_space<vmem>>, vector<1x128xf32>
    %54 = vector.shape_cast %53 : vector<1x128xf32> to vector<128xf32>
    %55 = vector.shape_cast %54 : vector<128xf32> to vector<1x1x128xf32>
    %c0_49 = arith.constant 0 : index
    %c0_50 = arith.constant 0 : index
    %c0_51 = arith.constant 0 : index
    %56 = vector.load %arg6[%c0_49, %c0_50, %c0_51] : memref<16x16x128xf32, #tpu.memory_space<vmem>>, vector<15x16x128xf32>
    %57 = vector.extract_strided_slice %35 {offsets = [1, 0, 0], sizes = [15, 16, 128], strides = [1, 1, 1]} : vector<16x16x128xf32> to vector<15x16x128xf32>
    %58 = vector.broadcast %55 : vector<1x1x128xf32> to vector<15x16x128xf32>
    %59 = arith.mulf %57, %58 : vector<15x16x128xf32>
    %60 = arith.addf %56, %59 : vector<15x16x128xf32>
    %c0_52 = arith.constant 0 : index
    %c0_53 = arith.constant 0 : index
    %c0_54 = arith.constant 0 : index
    %61 = vector.load %arg6[%c0_52, %c0_53, %c0_54] : memref<16x16x128xf32, #tpu.memory_space<vmem>>, vector<15x16x128xf32>
    tpu.vector_store %arg6[%c0_52, %c0_53, %c0_54], %60 {strides = array<i32>} : memref<16x16x128xf32, #tpu.memory_space<vmem>>, vector<15x16x128xf32>,
    %c0_55 = arith.constant 0 : index
    %c0_56 = arith.constant 0 : index
    %c1_57 = arith.constant 1 : index
    %c0_58 = arith.constant 0 : index
    %62 = vector.load %arg2[%c0_55, %c0_56, %c1_57, %c0_58] : memref<1x16x16x128xf32, #tpu.memory_space<vmem>>, vector<1x16x15x128xf32>
    %63 = vector.shape_cast %62 : vector<1x16x15x128xf32> to vector<16x15x128xf32>
    %c2 = arith.constant 2 : index
    %c0_59 = arith.constant 0 : index
    %64 = vector.load %arg3[%c2, %c0_59] : memref<9x128xf32, #tpu.memory_space<vmem>>, vector<1x128xf32>
    %65 = vector.shape_cast %64 : vector<1x128xf32> to vector<128xf32>
    %66 = vector.shape_cast %65 : vector<128xf32> to vector<1x1x128xf32>
    %c1_60 = arith.constant 1 : index
    %c0_61 = arith.constant 0 : index
    %c0_62 = arith.constant 0 : index
    %67 = vector.load %arg6[%c1_60, %c0_61, %c0_62] : memref<16x16x128xf32, #tpu.memory_space<vmem>>, vector<15x15x128xf32>
    %68 = vector.extract_strided_slice %63 {offsets = [0, 0, 0], sizes = [15, 15, 128], strides = [1, 1, 1]} : vector<16x15x128xf32> to vector<15x15x128xf32>
    %69 = vector.broadcast %66 : vector<1x1x128xf32> to vector<15x15x128xf32>
    %70 = arith.mulf %68, %69 : vector<15x15x128xf32>
    %71 = arith.addf %67, %70 : vector<15x15x128xf32>
    %c1_63 = arith.constant 1 : index
    %c0_64 = arith.constant 0 : index
    %c0_65 = arith.constant 0 : index
    %72 = vector.load %arg6[%c1_63, %c0_64, %c0_65] : memref<16x16x128xf32, #tpu.memory_space<vmem>>, vector<15x15x128xf32>
    tpu.vector_store %arg6[%c1_63, %c0_64, %c0_65], %71 {strides = array<i32>} : memref<16x16x128xf32, #tpu.memory_space<vmem>>, vector<15x15x128xf32>,
    %c5 = arith.constant 5 : index
    %c0_66 = arith.constant 0 : index
    %73 = vector.load %arg3[%c5, %c0_66] : memref<9x128xf32, #tpu.memory_space<vmem>>, vector<1x128xf32>
    %74 = vector.shape_cast %73 : vector<1x128xf32> to vector<128xf32>
    %75 = vector.shape_cast %74 : vector<128xf32> to vector<1x1x128xf32>
    %c0_67 = arith.constant 0 : index
    %c0_68 = arith.constant 0 : index
    %c0_69 = arith.constant 0 : index
    %76 = vector.load %arg6[%c0_67, %c0_68, %c0_69] : memref<16x16x128xf32, #tpu.memory_space<vmem>>, vector<16x15x128xf32>
    %77 = vector.broadcast %75 : vector<1x1x128xf32> to vector<16x15x128xf32>
    %78 = arith.mulf %63, %77 : vector<16x15x128xf32>
    %79 = arith.addf %76, %78 : vector<16x15x128xf32>
    %c0_70 = arith.constant 0 : index
    %c0_71 = arith.constant 0 : index
    %c0_72 = arith.constant 0 : index
    %80 = vector.load %arg6[%c0_70, %c0_71, %c0_72] : memref<16x16x128xf32, #tpu.memory_space<vmem>>, vector<16x15x128xf32>
    tpu.vector_store %arg6[%c0_70, %c0_71, %c0_72], %79 {strides = array<i32>} : memref<16x16x128xf32, #tpu.memory_space<vmem>>, vector<16x15x128xf32>,
    %c8 = arith.constant 8 : index
    %c0_73 = arith.constant 0 : index
    %81 = vector.load %arg3[%c8, %c0_73] : memref<9x128xf32, #tpu.memory_space<vmem>>, vector<1x128xf32>
    %82 = vector.shape_cast %81 : vector<1x128xf32> to vector<128xf32>
    %83 = vector.shape_cast %82 : vector<128xf32> to vector<1x1x128xf32>
    %c0_74 = arith.constant 0 : index
    %c0_75 = arith.constant 0 : index
    %c0_76 = arith.constant 0 : index
    %84 = vector.load %arg6[%c0_74, %c0_75, %c0_76] : memref<16x16x128xf32, #tpu.memory_space<vmem>>, vector<15x15x128xf32>
    %85 = vector.extract_strided_slice %63 {offsets = [1, 0, 0], sizes = [15, 15, 128], strides = [1, 1, 1]} : vector<16x15x128xf32> to vector<15x15x128xf32>
    %86 = vector.broadcast %83 : vector<1x1x128xf32> to vector<15x15x128xf32>
    %87 = arith.mulf %85, %86 : vector<15x15x128xf32>
    %88 = arith.addf %84, %87 : vector<15x15x128xf32>
    %c0_77 = arith.constant 0 : index
    %c0_78 = arith.constant 0 : index
    %c0_79 = arith.constant 0 : index
    %89 = vector.load %arg6[%c0_77, %c0_78, %c0_79] : memref<16x16x128xf32, #tpu.memory_space<vmem>>, vector<15x15x128xf32>
    tpu.vector_store %arg6[%c0_77, %c0_78, %c0_79], %88 {strides = array<i32>} : memref<16x16x128xf32, #tpu.memory_space<vmem>>, vector<15x15x128xf32>,
    %c0_80 = arith.constant 0 : index
    %c0_81 = arith.constant 0 : index
    %c0_82 = arith.constant 0 : index
    %90 = vector.load %arg6[%c0_80, %c0_81, %c0_82] : memref<16x16x128xf32, #tpu.memory_space<vmem>>, vector<16x16x128xf32>
    %c0_83 = arith.constant 0 : index
    %c0_84 = arith.constant 0 : index
    %c0_85 = arith.constant 0 : index
    %c0_86 = arith.constant 0 : index
    %91 = vector.load %arg5[%c0_83, %c0_84, %c0_85, %c0_86] : memref<1x16x16x128xf32, #tpu.memory_space<vmem>>, vector<1x16x16x128xf32>
    %92 = vector.shape_cast %91 : vector<1x16x16x128xf32> to vector<16x16x128xf32>
    %93 = vector.shape_cast %90 : vector<16x16x128xf32> to vector<1x16x16x128xf32>
    tpu.vector_store %arg5[%c0_83, %c0_84, %c0_85, %c0_86], %93 {strides = array<i32>} : memref<1x16x16x128xf32, #tpu.memory_space<vmem>>, vector<1x16x16x128xf32>,
    return
  }
  func.func @transform_0(%arg0: i32, %arg1: i32) -> (i32, i32, i32, i32) {
    %c0_i32 = arith.constant 0 : i32
    %c0_i32_0 = arith.constant 0 : i32
    %c0_i32_1 = arith.constant 0 : i32
    return %arg0, %c0_i32, %c0_i32_0, %arg1 : i32, i32, i32, i32
  }
  func.func @transform_1(%arg0: i32, %arg1: i32) -> (i32, i32) {
    %c0_i32 = arith.constant 0 : i32
    %c0_i32_0 = arith.constant 0 : i32
    return %c0_i32, %arg1 : i32, i32
  }
  func.func @transform_2(%arg0: i32, %arg1: i32) -> (i32, i32) {
    %c0_i32 = arith.constant 0 : i32
    %c0_i32_0 = arith.constant 0 : i32
    return %c0_i32, %arg1 : i32, i32
  }
  func.func @transform_3(%arg0: i32, %arg1: i32) -> (i32, i32, i32, i32) {
    %c0_i32 = arith.constant 0 : i32
    %c0_i32_0 = arith.constant 0 : i32
    %c0_i32_1 = arith.constant 0 : i32
    return %arg0, %c0_i32, %c0_i32_0, %arg1 : i32, i32, i32, i32
  }
}

</mosaic_0001>

<llo_original>
// kernel: tpu_custom_call.1
$region0: #{tpu_custom_call.1}
  #allocation0 [shape = 'u32[]', space=smem, size = 0x4, offset = 0x4, fixed_abs, tag = 'smem constant byte address 0x4 - core index']
  #allocation1 [shape = 'u32[144,128]{1,0:T(1,128)}', space=vmem, size = 0x12000, scoped, tag = 'internal scratch']
  #allocation2 [shape = 'f32[16,16,128]{2,1,0:T(8,128)}', space=vmem, size = 0x20000, scoped, tag = 'scratch operand']
  %s0 = inlined_call_operand.hbm [shape: f32[2,16,16,128], index: 0, kind: input, shape index: {}]
  %s1 = inlined_call_operand.hbm [shape: f32[9,128], index: 1, kind: input, shape index: {}]
  %s2 = inlined_call_operand.vmem [shape: f32[1,128], index: 2, kind: input, shape index: {}]
  %s3 = inlined_call_operand.hbm [shape: f32[2,16,16,128], index: 3, kind: output, shape index: {}]
  %s4 = sld [smem:[#allocation0]]
  $region53: #{tpu_custom_call.1} parent=0
    _
  %s6 = ssub.s32 1, %s4
  %s7 = scalar_select 0, %s6, %s4
  $region1: #{tpu_custom_call.1} parent=0
    #allocation3 [shape = 'u8[262144]{0}', space=vmem, size = 0x40000, scoped, tag = 'input window, operand 0']
    #allocation4 [shape = 's32[2]{0}', space=sflag, size = 0x8, scoped, tag = 'scoped memory for tpu_custom_call.1']
    #allocation5 [shape = 's32[2]{0}', space=sflag, size = 0x8, scoped, tag = 'scoped memory for tpu_custom_call.1']
    #allocation6 [shape = 'u8[8192]{0}', space=vmem, size = 0x2000, scoped, tag = 'input window, operand 1, single buffered']
    #allocation7 [shape = 's32[1]{0}', space=sflag, size = 0x4, scoped, tag = 'scoped memory for tpu_custom_call.1']
    #allocation8 [shape = 'u8[262144]{0}', space=vmem, size = 0x40000, scoped, tag = 'output window, operand 0']
    %8 = vsyncpa [#allocation4], 0
    %s9 = scalar_lea.sflag [#allocation4], 1
    %10 = vsyncpa %s9, 0
    %11 = vsyncpa [#allocation7], 0
    %12 = vsyncpa [#allocation5], 0
    %s13 = scalar_lea.sflag [#allocation5], 1
    %14 = vsyncpa %s13, 0
    loop: start=0, step=1, limit=4
    $region2: #{tpu_custom_call.1} parent=1 // loop_pre_header
      _
    $region3: #{tpu_custom_call.1} parent=1 // loop_header
      %s16 = sphi 0, %s20
      %p17 = scmp.ge.s32.totalorder %s16, 4
      %s23 = sphi 0, %s35
      %s24 = sphi 0, %s31
      %s25 = sphi 0, %s23
      %s26 = sphi 0, %s24
      %s27 = sphi 0, %s25
      %s28 = sphi 0, %s26
      %s40 = sphi 0, %s42
      %s43 = sphi 0, %s40
      %s44 = sphi 0, %s43
      %s60 = sphi 0, %s44
      %s66 = sphi 0, %s68
      %s69 = sphi 0, %s66
      %s70 = sphi 0, %s69
      %s86 = sphi 0, %s70
      %s92 = sphi 0, %s94
      %s95 = sphi 0, %s92
      %s96 = sphi 0, %s95
      %s112 = sphi 0, %s96
      %s120 = sphi 0, %s122
      %s123 = sphi 0, %s120
      %s124 = sphi 0, %s123
      %s140 = sphi 0, %s124
    $region4: #{tpu_custom_call.1} parent=1 // loop_header_branch
      %19 = sbr.rel (%p17) target = $region8
    $region5: #{tpu_custom_call.1} parent=1 // loop_body
      %s21 = ssub.s32 %s16, 1
      %s22 = ssub.s32 %s16, 2
      %s29 = sadd.s32 1, %s24
      %p30 = scmp.ge.s32.totalorder %s29, 1
      %s31 = scalar_select %p30, 0, %s29
      %s32 = sadd.s32 1, %s23
      %s33 = scalar_select %p30, %s32, %s23
      %p34 = scmp.ge.s32.totalorder %s33, 2
      %s35 = scalar_select %p34, 0, %s33
      %s36 = ssub.s32 %s23, %s35
      %s37 = ssub.s32 %s24, %s31
      %s38 = sor.u32 %s36, %s37
      %p39 = scmp.eq.s32.totalorder %s38, 0
      %s41 = sadd.s32 %s40, 1
      %s42 = scalar_select %p39, %s40, %s41
      %p45 = pneg %p39
      %p46 = scmp.eq.s32.totalorder %s16, 1
      %p47 = por %p45, %p46
      %p48 = scmp.ne.s32.totalorder %s40, %s43
      %p49 = scmp.eq.s32.totalorder %s16, 0
      %p50 = por %p48, %p49
      %p51 = scmp.ne.s32.totalorder %s40, %s43
      %p52 = scmp.eq.s32.totalorder %s21, 1
      %p53 = por %p51, %p52
      %p54 = scmp.ne.s32.totalorder %s43, %s44
      %p55 = scmp.eq.s32.totalorder %s21, 0
      %p56 = por %p54, %p55
      %p57 = scmp.ne.s32.totalorder %s43, %s44
      %p58 = scmp.eq.s32.totalorder %s22, 1
      %p59 = por %p57, %p58
      %p61 = scmp.ne.s32.totalorder %s44, %s60
      %p62 = scmp.eq.s32.totalorder %s22, 0
      %p63 = por %p61, %p62
      %s64 = ssub.s32 %s24, %s31
      %p65 = scmp.eq.s32.totalorder %s64, 0
      %s67 = sadd.s32 %s66, 1
      %s68 = scalar_select %p65, %s66, %s67
      %p71 = pneg %p65
      %p72 = scmp.eq.s32.totalorder %s16, 1
      %p73 = por %p71, %p72
      %p74 = scmp.ne.s32.totalorder %s66, %s69
      %p75 = scmp.eq.s32.totalorder %s16, 0
      %p76 = por %p74, %p75
      %p77 = scmp.ne.s32.totalorder %s66, %s69
      %p78 = scmp.eq.s32.totalorder %s21, 1
      %p79 = por %p77, %p78
      %p80 = scmp.ne.s32.totalorder %s69, %s70
      %p81 = scmp.eq.s32.totalorder %s21, 0
      %p82 = por %p80, %p81
      %p83 = scmp.ne.s32.totalorder %s69, %s70
      %p84 = scmp.eq.s32.totalorder %s22, 1
      %p85 = por %p83, %p84
      %p87 = scmp.ne.s32.totalorder %s70, %s86
      %p88 = scmp.eq.s32.totalorder %s22, 0
      %p89 = por %p87, %p88
      %s90 = ssub.s32 %s24, %s31
      %p91 = scmp.eq.s32.totalorder %s90, 0
      %s93 = sadd.s32 %s92, 1
      %s94 = scalar_select %p91, %s92, %s93
      %p97 = pneg %p91
      %p98 = scmp.eq.s32.totalorder %s16, 1
      %p99 = por %p97, %p98
      %p100 = scmp.ne.s32.totalorder %s92, %s95
      %p101 = scmp.eq.s32.totalorder %s16, 0
      %p102 = por %p100, %p101
      %p103 = scmp.ne.s32.totalorder %s92, %s95
      %p104 = scmp.eq.s32.totalorder %s21, 1
      %p105 = por %p103, %p104
      %p106 = scmp.ne.s32.totalorder %s95, %s96
      %p107 = scmp.eq.s32.totalorder %s21, 0
      %p108 = por %p106, %p107
      %p109 = scmp.ne.s32.totalorder %s95, %s96
      %p110 = scmp.eq.s32.totalorder %s22, 1
      %p111 = por %p109, %p110
      %p113 = scmp.ne.s32.totalorder %s96, %s112
      %p114 = scmp.eq.s32.totalorder %s22, 0
      %p115 = por %p113, %p114
      %s116 = ssub.s32 %s23, %s35
      %s117 = ssub.s32 %s24, %s31
      %s118 = sor.u32 %s116, %s117
      %p119 = scmp.eq.s32.totalorder %s118, 0
      %s121 = sadd.s32 %s120, 1
      %s122 = scalar_select %p119, %s120, %s121
      %p125 = pneg %p119
      %p126 = scmp.eq.s32.totalorder %s16, 1
      %p127 = por %p125, %p126
      %p128 = scmp.ne.s32.totalorder %s120, %s123
      %p129 = scmp.eq.s32.totalorder %s16, 0
      %p130 = por %p128, %p129
      %p131 = scmp.ne.s32.totalorder %s120, %s123
      %p132 = scmp.eq.s32.totalorder %s21, 1
      %p133 = por %p131, %p132
      %p134 = scmp.ne.s32.totalorder %s123, %s124
      %p135 = scmp.eq.s32.totalorder %s21, 0
      %p136 = por %p134, %p135
      %p137 = scmp.ne.s32.totalorder %s123, %s124
      %p138 = scmp.eq.s32.totalorder %s22, 1
      %p139 = por %p137, %p138
      %p141 = scmp.ne.s32.totalorder %s124, %s140
      %p142 = scmp.eq.s32.totalorder %s22, 0
      %p143 = por %p141, %p142
      %p144 = scmp.le.s32.totalorder 1, %s16
      %p145 = scmp.lt.s32.totalorder %s16, 3
      %p146 = pnand %p144, %p145
      %p147 = pneg %p146
      // Predicated region
      $region9: #{tpu_custom_call.1} parent=5 // pred_check
        _
      $region10: #{tpu_custom_call.1} parent=5 // pred_check_branch
        %149 = sbr.rel (%p146) target = $region12
      $region11: #{tpu_custom_call.1} parent=5 // pred_region
        %s150 = ssub.s32 %s16, 1
        // Predicated region
        $region13: #{tpu_custom_call.1} parent=11 // pred_check
          %p151 = pneg %p82
        $region14: #{tpu_custom_call.1} parent=11 // pred_check_branch
          %153 = sbr.rel (%p151) target = $region16
        $region15: #{tpu_custom_call.1} parent=11 // pred_region
          %s155 = ssub.s32 256, 256
          %156 = vsyncadd [#allocation7], %s155
          %s157 = smul.addr %s26, 128
          %s158 = scalar_lea.hbm %s1, %s157
          %s159 = sshll.u32 [#allocation6], 4
          %s160 = int_to_ptr.vmem [resolvable:$true] %s159
          %165 = dma.hbm_to_vmem [thread:$0]  %s158, 256, %s160, [#allocation7], 128, 128, 8
        $region16: #{tpu_custom_call.1} parent=11 // pred_fallthru
          _
        // Predicated region
        $region17: #{tpu_custom_call.1} parent=11 // pred_check
          %p166 = pneg %p108
        $region18: #{tpu_custom_call.1} parent=11 // pred_check_branch
          %168 = sbr.rel (%p166) target = $region20
        $region19: #{tpu_custom_call.1} parent=11 // pred_region
          %p169 = scmp.lt.s32.totalorder %s26, 0
          %s170 = scalar_select %p169, %s26, 0
          %s171 = scalar_lea.vmem %s2, %s170
        $region20: #{tpu_custom_call.1} parent=11 // pred_fallthru
          _
      $region12: #{tpu_custom_call.1} parent=5 // pred_fallthru
        _
      %p172 = scmp.lt.s32.totalorder %s16, 2
      // Predicated region
      $region21: #{tpu_custom_call.1} parent=5 // pred_check
        %p173 = pneg %p172
      $region22: #{tpu_custom_call.1} parent=5 // pred_check_branch
        %175 = sbr.rel (%p173) target = $region24
      $region23: #{tpu_custom_call.1} parent=5 // pred_region
        // Predicated region
        $region25: #{tpu_custom_call.1} parent=23 // pred_check
          %p176 = pneg %p50
        $region26: #{tpu_custom_call.1} parent=23 // pred_check_branch
          %178 = sbr.rel (%p176) target = $region28
        $region27: #{tpu_custom_call.1} parent=23 // pred_region
          %s179 = sand.u32 %s40, 1
          %s180 = scalar_lea.sflag [#allocation4], %s179
          %s181 = sand.u32 %s40, 1
          %s182 = smul.addr %s181, 256
          %s183 = scalar_lea.vmem [#allocation3], %s182
          %s185 = ssub.s32 4096, 4096
          %186 = vsyncadd %s180, %s185
          %s187 = smul.addr %s23, 32
          %s188 = sadd.s32 %s24, %s187
          %s189 = smul.addr %s188, 128
          %s190 = scalar_lea.hbm %s0, %s189
          %s191 = sshll.u32 %s183, 4
          %s192 = int_to_ptr.vmem [resolvable:$true] %s191
          %197 = dma.hbm_to_vmem [thread:$0]  %s190, 4096, %s192, %s180, 128, 128, 8
        $region28: #{tpu_custom_call.1} parent=23 // pred_fallthru
          _
      $region24: #{tpu_custom_call.1} parent=5 // pred_fallthru
        _
      %p198 = scmp.le.s32.totalorder 1, %s16
      %p199 = scmp.lt.s32.totalorder %s16, 3
      %p200 = pnand %p198, %p199
      %p201 = pneg %p200
      // Predicated region
      $region29: #{tpu_custom_call.1} parent=5 // pred_check
        _
      $region30: #{tpu_custom_call.1} parent=5 // pred_check_branch
        %203 = sbr.rel (%p200) target = $region32
      $region31: #{tpu_custom_call.1} parent=5 // pred_region
        %s204 = ssub.s32 %s16, 1
        %s205 = sand.u32 %s43, 1
        %s206 = scalar_lea.sflag [#allocation4], %s205
        %s207 = sand.u32 %s43, 1
        %s208 = smul.addr %s207, 256
        %s209 = scalar_lea.vmem [#allocation3], %s208
        // Predicated region
        $region33: #{tpu_custom_call.1} parent=31 // pred_check
          %p210 = pneg %p56
        $region34: #{tpu_custom_call.1} parent=31 // pred_check_branch
          %212 = sbr.rel (%p210) target = $region36
        $region35: #{tpu_custom_call.1} parent=31 // pred_region
          %213 = dma.done %s206, 4096
        $region36: #{tpu_custom_call.1} parent=31 // pred_fallthru
          _
        // Predicated region
        $region37: #{tpu_custom_call.1} parent=31 // pred_check
          %p214 = pneg %p82
        $region38: #{tpu_custom_call.1} parent=31 // pred_check_branch
          %216 = sbr.rel (%p214) target = $region40
        $region39: #{tpu_custom_call.1} parent=31 // pred_region
          %217 = dma.done [#allocation7], 256
        $region40: #{tpu_custom_call.1} parent=31 // pred_fallthru
          _
        %s218 = sand.u32 %s43, 1
        %s219 = scalar_lea.sflag [#allocation4], %s218
        %s220 = sand.u32 %s43, 1
        %s221 = smul.addr %s220, 256
        %s222 = scalar_lea.vmem [#allocation3], %s221
        %p223 = pneg %p56
        %p224 = pneg %p53
        %p225 = pneg %p82
        %p226 = pneg %p79
        %p227 = scmp.lt.s32.totalorder %s26, 0
        %s228 = scalar_select %p227, %s26, 0
        %s229 = scalar_lea.vmem %s2, %s228
        %p230 = pneg %p108
        %p231 = pneg %p105
        %p232 = pneg %p136
        %p233 = pneg %p133
        %s234 = sand.u32 %s123, 1
        %s235 = scalar_lea.sflag [#allocation5], %s234
        %s236 = sand.u32 %s123, 1
        %s237 = smul.addr %s236, 256
        %s238 = scalar_lea.vmem [#allocation8], %s237
        %p239 = scmp.lt.s32.totalorder %s26, 0
        %s240 = scalar_select %p239, %s26, 0
        %s241 = scalar_lea.vmem %s2, %s240
        %v242 = vld [vmem:[%s241] sm:$0x1]
        %v244 = vlaneseq
        %v245 = vshrl.u32 %v244, 7
        %v246 = vsub.s32 0, %v245
        %v247 = vrot.slane %v242, %v246
        %249 = vst [vmem:[#allocation2] sm:$0xff] %v247
        %250 = vst [vmem:[#allocation2 + $0x8] sm:$0xff] %v247
        %251 = vst [vmem:[#allocation2 + $0x10] sm:$0xff] %v247
        %252 = vst [vmem:[#allocation2 + $0x18] sm:$0xff] %v247
        %253 = vst [vmem:[#allocation2 + $0x20] sm:$0xff] %v247
        %254 = vst [vmem:[#allocation2 + $0x28] sm:$0xff] %v247
        %255 = vst [vmem:[#allocation2 + $0x30] sm:$0xff] %v247
        %256 = vst [vmem:[#allocation2 + $0x38] sm:$0xff] %v247
        %257 = vst [vmem:[#allocation2 + $0x40] sm:$0xff] %v247
        %258 = vst [vmem:[#allocation2 + $0x48] sm:$0xff] %v247
        %259 = vst [vmem:[#allocation2 + $0x50] sm:$0xff] %v247
        %260 = vst [vmem:[#allocation2 + $0x58] sm:$0xff] %v247
        %261 = vst [vmem:[#allocation2 + $0x60] sm:$0xff] %v247
        %262 = vst [vmem:[#allocation2 + $0x68] sm:$0xff] %v247
        %263 = vst [vmem:[#allocation2 + $0x70] sm:$0xff] %v247
        %264 = vst [vmem:[#allocation2 + $0x78] sm:$0xff] %v247
        %265 = vst [vmem:[#allocation2 + $0x80] sm:$0xff] %v247
        %266 = vst [vmem:[#allocation2 + $0x88] sm:$0xff] %v247
        %267 = vst [vmem:[#allocation2 + $0x90] sm:$0xff] %v247
        %268 = vst [vmem:[#allocation2 + $0x98] sm:$0xff] %v247
        %269 = vst [vmem:[#allocation2 + $0xa0] sm:$0xff] %v247
        %270 = vst [vmem:[#allocation2 + $0xa8] sm:$0xff] %v247
        %271 = vst [vmem:[#allocation2 + $0xb0] sm:$0xff] %v247
        %272 = vst [vmem:[#allocation2 + $0xb8] sm:$0xff] %v247
        %273 = vst [vmem:[#allocation2 + $0xc0] sm:$0xff] %v247
        %274 = vst [vmem:[#allocation2 + $0xc8] sm:$0xff] %v247
        %275 = vst [vmem:[#allocation2 + $0xd0] sm:$0xff] %v247
        %276 = vst [vmem:[#allocation2 + $0xd8] sm:$0xff] %v247
        %277 = vst [vmem:[#allocation2 + $0xe0] sm:$0xff] %v247
        %278 = vst [vmem:[#allocation2 + $0xe8] sm:$0xff] %v247
        %279 = vst [vmem:[#allocation2 + $0xf0] sm:$0xff] %v247
        %280 = vst [vmem:[#allocation2 + $0xf8] sm:$0xff] %v247
        %v281 = vld [vmem:[%s209] sm:$0xff]
        %v282 = vld [vmem:[%s209 + $0x8] sm:$0x7f]
        %v283 = vld [vmem:[%s209 + $0x10] sm:$0xff]
        %v284 = vld [vmem:[%s209 + $0x18] sm:$0x7f]
        %v285 = vld [vmem:[%s209 + $0x20] sm:$0xff]
        %v286 = vld [vmem:[%s209 + $0x28] sm:$0x7f]
        %v287 = vld [vmem:[%s209 + $0x30] sm:$0xff]
        %v288 = vld [vmem:[%s209 + $0x38] sm:$0x7f]
        %v289 = vld [vmem:[%s209 + $0x40] sm:$0xff]
        %v290 = vld [vmem:[%s209 + $0x48] sm:$0x7f]
        %v291 = vld [vmem:[%s209 + $0x50] sm:$0xff]
        %v292 = vld [vmem:[%s209 + $0x58] sm:$0x7f]
        %v293 = vld [vmem:[%s209 + $0x60] sm:$0xff]
        %v294 = vld [vmem:[%s209 + $0x68] sm:$0x7f]
        %v295 = vld [vmem:[%s209 + $0x70] sm:$0xff]
        %v296 = vld [vmem:[%s209 + $0x78] sm:$0x7f]
        %v297 = vld [vmem:[%s209 + $0x80] sm:$0xff]
        %v298 = vld [vmem:[%s209 + $0x88] sm:$0x7f]
        %v299 = vld [vmem:[%s209 + $0x90] sm:$0xff]
        %v300 = vld [vmem:[%s209 + $0x98] sm:$0x7f]
        %v301 = vld [vmem:[%s209 + $0xa0] sm:$0xff]
        %v302 = vld [vmem:[%s209 + $0xa8] sm:$0x7f]
        %v303 = vld [vmem:[%s209 + $0xb0] sm:$0xff]
        %v304 = vld [vmem:[%s209 + $0xb8] sm:$0x7f]
        %v305 = vld [vmem:[%s209 + $0xc0] sm:$0xff]
        %v306 = vld [vmem:[%s209 + $0xc8] sm:$0x7f]
        %v307 = vld [vmem:[%s209 + $0xd0] sm:$0xff]
        %v308 = vld [vmem:[%s209 + $0xd8] sm:$0x7f]
        %v309 = vld [vmem:[%s209 + $0xe0] sm:$0xff]
        %v310 = vld [vmem:[%s209 + $0xe8] sm:$0x7f]
        %v311 = vld [vmem:[%s209 + $0xf0] sm:$0xff]
        %v312 = vld [vmem:[%s209 + $0xf8] sm:$0x7f]
        %v313 = vld [vmem:[#allocation6] sm:$0x1]
        %s314 = scalar_lea.vmem [#allocation2], 16
        %v315 = vld [vmem:[%s314 + $0x1] sm:$0xff]
        %v316 = vld [vmem:[%s314 + $0x9] sm:$0x7f]
        %v317 = vld [vmem:[%s314 + $0x11] sm:$0xff]
        %v318 = vld [vmem:[%s314 + $0x19] sm:$0x7f]
        %v319 = vld [vmem:[%s314 + $0x21] sm:$0xff]
        %v320 = vld [vmem:[%s314 + $0x29] sm:$0x7f]
        %v321 = vld [vmem:[%s314 + $0x31] sm:$0xff]
        %v322 = vld [vmem:[%s314 + $0x39] sm:$0x7f]
        %v323 = vld [vmem:[%s314 + $0x41] sm:$0xff]
        %v324 = vld [vmem:[%s314 + $0x49] sm:$0x7f]
        %v325 = vld [vmem:[%s314 + $0x51] sm:$0xff]
        %v326 = vld [vmem:[%s314 + $0x59] sm:$0x7f]
        %v327 = vld [vmem:[%s314 + $0x61] sm:$0xff]
        %v328 = vld [vmem:[%s314 + $0x69] sm:$0x7f]
        %v329 = vld [vmem:[%s314 + $0x71] sm:$0xff]
        %v330 = vld [vmem:[%s314 + $0x79] sm:$0x7f]
        %v331 = vld [vmem:[%s314 + $0x81] sm:$0xff]
        %v332 = vld [vmem:[%s314 + $0x89] sm:$0x7f]
        %v333 = vld [vmem:[%s314 + $0x91] sm:$0xff]
        %v334 = vld [vmem:[%s314 + $0x99] sm:$0x7f]
        %v335 = vld [vmem:[%s314 + $0xa1] sm:$0xff]
        %v336 = vld [vmem:[%s314 + $0xa9] sm:$0x7f]
        %v337 = vld [vmem:[%s314 + $0xb1] sm:$0xff]
        %v338 = vld [vmem:[%s314 + $0xb9] sm:$0x7f]
        %v339 = vld [vmem:[%s314 + $0xc1] sm:$0xff]
        %v340 = vld [vmem:[%s314 + $0xc9] sm:$0x7f]
        %v341 = vld [vmem:[%s314 + $0xd1] sm:$0xff]
        %v342 = vld [vmem:[%s314 + $0xd9] sm:$0x7f]
        %v343 = vld [vmem:[%s314 + $0xe1] sm:$0xff]
        %v344 = vld [vmem:[%s314 + $0xe9] sm:$0x7f]
        %v345 = vlaneseq
        %v346 = vshrl.u32 %v345, 7
        %v347 = vsub.s32 0, %v346
        %v348 = vrot.slane %v313, %v347
        %v349 = vmul.f32 %v281, %v348
        %v350 = vmul.f32 %v282, %v348
        %v351 = vmul.f32 %v283, %v348
        %v352 = vmul.f32 %v284, %v348
        %v353 = vmul.f32 %v285, %v348
        %v354 = vmul.f32 %v286, %v348
        %v355 = vmul.f32 %v287, %v348
        %v356 = vmul.f32 %v288, %v348
        %v357 = vmul.f32 %v289, %v348
        %v358 = vmul.f32 %v290, %v348
        %v359 = vmul.f32 %v291, %v348
        %v360 = vmul.f32 %v292, %v348
        %v361 = vmul.f32 %v293, %v348
        %v362 = vmul.f32 %v294, %v348
        %v363 = vmul.f32 %v295, %v348
        %v364 = vmul.f32 %v296, %v348
        %v365 = vmul.f32 %v297, %v348
        %v366 = vmul.f32 %v298, %v348
        %v367 = vmul.f32 %v299, %v348
        %v368 = vmul.f32 %v300, %v348
        %v369 = vmul.f32 %v301, %v348
        %v370 = vmul.f32 %v302, %v348
        %v371 = vmul.f32 %v303, %v348
        %v372 = vmul.f32 %v304, %v348
        %v373 = vmul.f32 %v305, %v348
        %v374 = vmul.f32 %v306, %v348
        %v375 = vmul.f32 %v307, %v348
        %v376 = vmul.f32 %v308, %v348
        %v377 = vmul.f32 %v309, %v348
        %v378 = vmul.f32 %v310, %v348
        %v379 = vadd.f32 %v315, %v349
        %v380 = vadd.f32 %v316, %v350
        %v381 = vadd.f32 %v317, %v351
        %v382 = vadd.f32 %v318, %v352
        %v383 = vadd.f32 %v319, %v353
        %v384 = vadd.f32 %v320, %v354
        %v385 = vadd.f32 %v321, %v355
        %v386 = vadd.f32 %v322, %v356
        %v387 = vadd.f32 %v323, %v357
        %v388 = vadd.f32 %v324, %v358
        %v389 = vadd.f32 %v325, %v359
        %v390 = vadd.f32 %v326, %v360
        %v391 = vadd.f32 %v327, %v361
        %v392 = vadd.f32 %v328, %v362
        %v393 = vadd.f32 %v329, %v363
        %v394 = vadd.f32 %v330, %v364
        %v395 = vadd.f32 %v331, %v365
        %v396 = vadd.f32 %v332, %v366
        %v397 = vadd.f32 %v333, %v367
        %v398 = vadd.f32 %v334, %v368
        %v399 = vadd.f32 %v335, %v369
        %v400 = vadd.f32 %v336, %v370
        %v401 = vadd.f32 %v337, %v371
        %v402 = vadd.f32 %v338, %v372
        %v403 = vadd.f32 %v339, %v373
        %v404 = vadd.f32 %v340, %v374
        %v405 = vadd.f32 %v341, %v375
        %v406 = vadd.f32 %v342, %v376
        %v407 = vadd.f32 %v343, %v377
        %v408 = vadd.f32 %v344, %v378
        %409 = vst [vmem:[%s314 + $0x1] sm:$0xff] %v379
        %410 = vst [vmem:[%s314 + $0x9] sm:$0x7f] %v380
        %411 = vst [vmem:[%s314 + $0x11] sm:$0xff] %v381
        %412 = vst [vmem:[%s314 + $0x19] sm:$0x7f] %v382
        %413 = vst [vmem:[%s314 + $0x21] sm:$0xff] %v383
        %414 = vst [vmem:[%s314 + $0x29] sm:$0x7f] %v384
        %415 = vst [vmem:[%s314 + $0x31] sm:$0xff] %v385
        %416 = vst [vmem:[%s314 + $0x39] sm:$0x7f] %v386
        %417 = vst [vmem:[%s314 + $0x41] sm:$0xff] %v387
        %418 = vst [vmem:[%s314 + $0x49] sm:$0x7f] %v388
        %419 = vst [vmem:[%s314 + $0x51] sm:$0xff] %v389
        %420 = vst [vmem:[%s314 + $0x59] sm:$0x7f] %v390
        %421 = vst [vmem:[%s314 + $0x61] sm:$0xff] %v391
        %422 = vst [vmem:[%s314 + $0x69] sm:$0x7f] %v392
        %423 = vst [vmem:[%s314 + $0x71] sm:$0xff] %v393
        %424 = vst [vmem:[%s314 + $0x79] sm:$0x7f] %v394
        %425 = vst [vmem:[%s314 + $0x81] sm:$0xff] %v395
        %426 = vst [vmem:[%s314 + $0x89] sm:$0x7f] %v396
        %427 = vst [vmem:[%s314 + $0x91] sm:$0xff] %v397
        %428 = vst [vmem:[%s314 + $0x99] sm:$0x7f] %v398
        %429 = vst [vmem:[%s314 + $0xa1] sm:$0xff] %v399
        %430 = vst [vmem:[%s314 + $0xa9] sm:$0x7f] %v400
        %431 = vst [vmem:[%s314 + $0xb1] sm:$0xff] %v401
        %432 = vst [vmem:[%s314 + $0xb9] sm:$0x7f] %v402
        %433 = vst [vmem:[%s314 + $0xc1] sm:$0xff] %v403
        %434 = vst [vmem:[%s314 + $0xc9] sm:$0x7f] %v404
        %435 = vst [vmem:[%s314 + $0xd1] sm:$0xff] %v405
        %436 = vst [vmem:[%s314 + $0xd9] sm:$0x7f] %v406
        %437 = vst [vmem:[%s314 + $0xe1] sm:$0xff] %v407
        %438 = vst [vmem:[%s314 + $0xe9] sm:$0x7f] %v408
        %v439 = vld [vmem:[#allocation6 + $0x3] sm:$0x1]
        %v440 = vld [vmem:[#allocation2 + $0x1] sm:$0xff]
        %v441 = vld [vmem:[#allocation2 + $0x9] sm:$0x7f]
        %v442 = vld [vmem:[#allocation2 + $0x11] sm:$0xff]
        %v443 = vld [vmem:[#allocation2 + $0x19] sm:$0x7f]
        %v444 = vld [vmem:[#allocation2 + $0x21] sm:$0xff]
        %v445 = vld [vmem:[#allocation2 + $0x29] sm:$0x7f]
        %v446 = vld [vmem:[#allocation2 + $0x31] sm:$0xff]
        %v447 = vld [vmem:[#allocation2 + $0x39] sm:$0x7f]
        %v448 = vld [vmem:[#allocation2 + $0x41] sm:$0xff]
        %v449 = vld [vmem:[#allocation2 + $0x49] sm:$0x7f]
        %v450 = vld [vmem:[#allocation2 + $0x51] sm:$0xff]
        %v451 = vld [vmem:[#allocation2 + $0x59] sm:$0x7f]
        %v452 = vld [vmem:[#allocation2 + $0x61] sm:$0xff]
        %v453 = vld [vmem:[#allocation2 + $0x69] sm:$0x7f]
        %v454 = vld [vmem:[#allocation2 + $0x71] sm:$0xff]
        %v455 = vld [vmem:[#allocation2 + $0x79] sm:$0x7f]
        %v456 = vld [vmem:[#allocation2 + $0x81] sm:$0xff]
        %v457 = vld [vmem:[#allocation2 + $0x89] sm:$0x7f]
        %v458 = vld [vmem:[#allocation2 + $0x91] sm:$0xff]
        %v459 = vld [vmem:[#allocation2 + $0x99] sm:$0x7f]
        %v460 = vld [vmem:[#allocation2 + $0xa1] sm:$0xff]
        %v461 = vld [vmem:[#allocation2 + $0xa9] sm:$0x7f]
        %v462 = vld [vmem:[#allocation2 + $0xb1] sm:$0xff]
        %v463 = vld [vmem:[#allocation2 + $0xb9] sm:$0x7f]
        %v464 = vld [vmem:[#allocation2 + $0xc1] sm:$0xff]
        %v465 = vld [vmem:[#allocation2 + $0xc9] sm:$0x7f]
        %v466 = vld [vmem:[#allocation2 + $0xd1] sm:$0xff]
        %v467 = vld [vmem:[#allocation2 + $0xd9] sm:$0x7f]
        %v468 = vld [vmem:[#allocation2 + $0xe1] sm:$0xff]
        %v469 = vld [vmem:[#allocation2 + $0xe9] sm:$0x7f]
        %v470 = vld [vmem:[#allocation2 + $0xf1] sm:$0xff]
        %v471 = vld [vmem:[#allocation2 + $0xf9] sm:$0x7f]
        %v472 = vlaneseq
        %v473 = vshrl.u32 %v472, 7
        %v474 = vsub.s32 0, %v473
        %v475 = vrot.slane %v439, %v474
        %v476 = vmul.f32 %v281, %v475
        %v477 = vmul.f32 %v282, %v475
        %v478 = vmul.f32 %v283, %v475
        %v479 = vmul.f32 %v284, %v475
        %v480 = vmul.f32 %v285, %v475
        %v481 = vmul.f32 %v286, %v475
        %v482 = vmul.f32 %v287, %v475
        %v483 = vmul.f32 %v288, %v475
        %v484 = vmul.f32 %v289, %v475
        %v485 = vmul.f32 %v290, %v475
        %v486 = vmul.f32 %v291, %v475
        %v487 = vmul.f32 %v292, %v475
        %v488 = vmul.f32 %v293, %v475
        %v489 = vmul.f32 %v294, %v475
        %v490 = vmul.f32 %v295, %v475
        %v491 = vmul.f32 %v296, %v475
        %v492 = vmul.f32 %v297, %v475
        %v493 = vmul.f32 %v298, %v475
        %v494 = vmul.f32 %v299, %v475
        %v495 = vmul.f32 %v300, %v475
        %v496 = vmul.f32 %v301, %v475
        %v497 = vmul.f32 %v302, %v475
        %v498 = vmul.f32 %v303, %v475
        %v499 = vmul.f32 %v304, %v475
        %v500 = vmul.f32 %v305, %v475
        %v501 = vmul.f32 %v306, %v475
        %v502 = vmul.f32 %v307, %v475
        %v503 = vmul.f32 %v308, %v475
        %v504 = vmul.f32 %v309, %v475
        %v505 = vmul.f32 %v310, %v475
        %v506 = vmul.f32 %v311, %v475
        %v507 = vmul.f32 %v312, %v475
        %v508 = vadd.f32 %v440, %v476
        %v509 = vadd.f32 %v441, %v477
        %v510 = vadd.f32 %v442, %v478
        %v511 = vadd.f32 %v443, %v479
        %v512 = vadd.f32 %v444, %v480
        %v513 = vadd.f32 %v445, %v481
        %v514 = vadd.f32 %v446, %v482
        %v515 = vadd.f32 %v447, %v483
        %v516 = vadd.f32 %v448, %v484
        %v517 = vadd.f32 %v449, %v485
        %v518 = vadd.f32 %v450, %v486
        %v519 = vadd.f32 %v451, %v487
        %v520 = vadd.f32 %v452, %v488
        %v521 = vadd.f32 %v453, %v489
        %v522 = vadd.f32 %v454, %v490
        %v523 = vadd.f32 %v455, %v491
        %v524 = vadd.f32 %v456, %v492
        %v525 = vadd.f32 %v457, %v493
        %v526 = vadd.f32 %v458, %v494
        %v527 = vadd.f32 %v459, %v495
        %v528 = vadd.f32 %v460, %v496
        %v529 = vadd.f32 %v461, %v497
        %v530 = vadd.f32 %v462, %v498
        %v531 = vadd.f32 %v463, %v499
        %v532 = vadd.f32 %v464, %v500
        %v533 = vadd.f32 %v465, %v501
        %v534 = vadd.f32 %v466, %v502
        %v535 = vadd.f32 %v467, %v503
        %v536 = vadd.f32 %v468, %v504
        %v537 = vadd.f32 %v469, %v505
        %v538 = vadd.f32 %v470, %v506
        %v539 = vadd.f32 %v471, %v507
        %540 = vst [vmem:[#allocation2 + $0x1] sm:$0xff] %v508
        %541 = vst [vmem:[#allocation2 + $0x9] sm:$0x7f] %v509
        %542 = vst [vmem:[#allocation2 + $0x11] sm:$0xff] %v510
        %543 = vst [vmem:[#allocation2 + $0x19] sm:$0x7f] %v511
        %544 = vst [vmem:[#allocation2 + $0x21] sm:$0xff] %v512
        %545 = vst [vmem:[#allocation2 + $0x29] sm:$0x7f] %v513
        %546 = vst [vmem:[#allocation2 + $0x31] sm:$0xff] %v514
        %547 = vst [vmem:[#allocation2 + $0x39] sm:$0x7f] %v515
        %548 = vst [vmem:[#allocation2 + $0x41] sm:$0xff] %v516
        %549 = vst [vmem:[#allocation2 + $0x49] sm:$0x7f] %v517
        %550 = vst [vmem:[#allocation2 + $0x51] sm:$0xff] %v518
        %551 = vst [vmem:[#allocation2 + $0x59] sm:$0x7f] %v519
        %552 = vst [vmem:[#allocation2 + $0x61] sm:$0xff] %v520
        %553 = vst [vmem:[#allocation2 + $0x69] sm:$0x7f] %v521
        %554 = vst [vmem:[#allocation2 + $0x71] sm:$0xff] %v522
        %555 = vst [vmem:[#allocation2 + $0x79] sm:$0x7f] %v523
        %556 = vst [vmem:[#allocation2 + $0x81] sm:$0xff] %v524
        %557 = vst [vmem:[#allocation2 + $0x89] sm:$0x7f] %v525
        %558 = vst [vmem:[#allocation2 + $0x91] sm:$0xff] %v526
        %559 = vst [vmem:[#allocation2 + $0x99] sm:$0x7f] %v527
        %560 = vst [vmem:[#allocation2 + $0xa1] sm:$0xff] %v528
        %561 = vst [vmem:[#allocation2 + $0xa9] sm:$0x7f] %v529
        %562 = vst [vmem:[#allocation2 + $0xb1] sm:$0xff] %v530
        %563 = vst [vmem:[#allocation2 + $0xb9] sm:$0x7f] %v531
        %564 = vst [vmem:[#allocation2 + $0xc1] sm:$0xff] %v532
        %565 = vst [vmem:[#allocation2 + $0xc9] sm:$0x7f] %v533
        %566 = vst [vmem:[#allocation2 + $0xd1] sm:$0xff] %v534
        %567 = vst [vmem:[#allocation2 + $0xd9] sm:$0x7f] %v535
        %568 = vst [vmem:[#allocation2 + $0xe1] sm:$0xff] %v536
        %569 = vst [vmem:[#allocation2 + $0xe9] sm:$0x7f] %v537
        %570 = vst [vmem:[#allocation2 + $0xf1] sm:$0xff] %v538
        %571 = vst [vmem:[#allocation2 + $0xf9] sm:$0x7f] %v539
        %v572 = vld [vmem:[#allocation6 + $0x6] sm:$0x1]
        %v573 = vld [vmem:[#allocation2 + $0x1] sm:$0xff]
        %v574 = vld [vmem:[#allocation2 + $0x9] sm:$0x7f]
        %v575 = vld [vmem:[#allocation2 + $0x11] sm:$0xff]
        %v576 = vld [vmem:[#allocation2 + $0x19] sm:$0x7f]
        %v577 = vld [vmem:[#allocation2 + $0x21] sm:$0xff]
        %v578 = vld [vmem:[#allocation2 + $0x29] sm:$0x7f]
        %v579 = vld [vmem:[#allocation2 + $0x31] sm:$0xff]
        %v580 = vld [vmem:[#allocation2 + $0x39] sm:$0x7f]
        %v581 = vld [vmem:[#allocation2 + $0x41] sm:$0xff]
        %v582 = vld [vmem:[#allocation2 + $0x49] sm:$0x7f]
        %v583 = vld [vmem:[#allocation2 + $0x51] sm:$0xff]
        %v584 = vld [vmem:[#allocation2 + $0x59] sm:$0x7f]
        %v585 = vld [vmem:[#allocation2 + $0x61] sm:$0xff]
        %v586 = vld [vmem:[#allocation2 + $0x69] sm:$0x7f]
        %v587 = vld [vmem:[#allocation2 + $0x71] sm:$0xff]
        %v588 = vld [vmem:[#allocation2 + $0x79] sm:$0x7f]
        %v589 = vld [vmem:[#allocation2 + $0x81] sm:$0xff]
        %v590 = vld [vmem:[#allocation2 + $0x89] sm:$0x7f]
        %v591 = vld [vmem:[#allocation2 + $0x91] sm:$0xff]
        %v592 = vld [vmem:[#allocation2 + $0x99] sm:$0x7f]
        %v593 = vld [vmem:[#allocation2 + $0xa1] sm:$0xff]
        %v594 = vld [vmem:[#allocation2 + $0xa9] sm:$0x7f]
        %v595 = vld [vmem:[#allocation2 + $0xb1] sm:$0xff]
        %v596 = vld [vmem:[#allocation2 + $0xb9] sm:$0x7f]
        %v597 = vld [vmem:[#allocation2 + $0xc1] sm:$0xff]
        %v598 = vld [vmem:[#allocation2 + $0xc9] sm:$0x7f]
        %v599 = vld [vmem:[#allocation2 + $0xd1] sm:$0xff]
        %v600 = vld [vmem:[#allocation2 + $0xd9] sm:$0x7f]
        %v601 = vld [vmem:[#allocation2 + $0xe1] sm:$0xff]
        %v602 = vld [vmem:[#allocation2 + $0xe9] sm:$0x7f]
        %v603 = vlaneseq
        %v604 = vshrl.u32 %v603, 7
        %v605 = vsub.s32 0, %v604
        %v606 = vrot.slane %v572, %v605
        %v607 = vmul.f32 %v283, %v606
        %v608 = vmul.f32 %v284, %v606
        %v609 = vmul.f32 %v285, %v606
        %v610 = vmul.f32 %v286, %v606
        %v611 = vmul.f32 %v287, %v606
        %v612 = vmul.f32 %v288, %v606
        %v613 = vmul.f32 %v289, %v606
        %v614 = vmul.f32 %v290, %v606
        %v615 = vmul.f32 %v291, %v606
        %v616 = vmul.f32 %v292, %v606
        %v617 = vmul.f32 %v293, %v606
        %v618 = vmul.f32 %v294, %v606
        %v619 = vmul.f32 %v295, %v606
        %v620 = vmul.f32 %v296, %v606
        %v621 = vmul.f32 %v297, %v606
        %v622 = vmul.f32 %v298, %v606
        %v623 = vmul.f32 %v299, %v606
        %v624 = vmul.f32 %v300, %v606
        %v625 = vmul.f32 %v301, %v606
        %v626 = vmul.f32 %v302, %v606
        %v627 = vmul.f32 %v303, %v606
        %v628 = vmul.f32 %v304, %v606
        %v629 = vmul.f32 %v305, %v606
        %v630 = vmul.f32 %v306, %v606
        %v631 = vmul.f32 %v307, %v606
        %v632 = vmul.f32 %v308, %v606
        %v633 = vmul.f32 %v309, %v606
        %v634 = vmul.f32 %v310, %v606
        %v635 = vmul.f32 %v311, %v606
        %v636 = vmul.f32 %v312, %v606
        %v637 = vadd.f32 %v573, %v607
        %v638 = vadd.f32 %v574, %v608
        %v639 = vadd.f32 %v575, %v609
        %v640 = vadd.f32 %v576, %v610
        %v641 = vadd.f32 %v577, %v611
        %v642 = vadd.f32 %v578, %v612
        %v643 = vadd.f32 %v579, %v613
        %v644 = vadd.f32 %v580, %v614
        %v645 = vadd.f32 %v581, %v615
        %v646 = vadd.f32 %v582, %v616
        %v647 = vadd.f32 %v583, %v617
        %v648 = vadd.f32 %v584, %v618
        %v649 = vadd.f32 %v585, %v619
        %v650 = vadd.f32 %v586, %v620
        %v651 = vadd.f32 %v587, %v621
        %v652 = vadd.f32 %v588, %v622
        %v653 = vadd.f32 %v589, %v623
        %v654 = vadd.f32 %v590, %v624
        %v655 = vadd.f32 %v591, %v625
        %v656 = vadd.f32 %v592, %v626
        %v657 = vadd.f32 %v593, %v627
        %v658 = vadd.f32 %v594, %v628
        %v659 = vadd.f32 %v595, %v629
        %v660 = vadd.f32 %v596, %v630
        %v661 = vadd.f32 %v597, %v631
        %v662 = vadd.f32 %v598, %v632
        %v663 = vadd.f32 %v599, %v633
        %v664 = vadd.f32 %v600, %v634
        %v665 = vadd.f32 %v601, %v635
        %v666 = vadd.f32 %v602, %v636
        %667 = vst [vmem:[#allocation2 + $0x1] sm:$0xff] %v637
        %668 = vst [vmem:[#allocation2 + $0x9] sm:$0x7f] %v638
        %669 = vst [vmem:[#allocation2 + $0x11] sm:$0xff] %v639
        %670 = vst [vmem:[#allocation2 + $0x19] sm:$0x7f] %v640
        %671 = vst [vmem:[#allocation2 + $0x21] sm:$0xff] %v641
        %672 = vst [vmem:[#allocation2 + $0x29] sm:$0x7f] %v642
        %673 = vst [vmem:[#allocation2 + $0x31] sm:$0xff] %v643
        %674 = vst [vmem:[#allocation2 + $0x39] sm:$0x7f] %v644
        %675 = vst [vmem:[#allocation2 + $0x41] sm:$0xff] %v645
        %676 = vst [vmem:[#allocation2 + $0x49] sm:$0x7f] %v646
        %677 = vst [vmem:[#allocation2 + $0x51] sm:$0xff] %v647
        %678 = vst [vmem:[#allocation2 + $0x59] sm:$0x7f] %v648
        %679 = vst [vmem:[#allocation2 + $0x61] sm:$0xff] %v649
        %680 = vst [vmem:[#allocation2 + $0x69] sm:$0x7f] %v650
        %681 = vst [vmem:[#allocation2 + $0x71] sm:$0xff] %v651
        %682 = vst [vmem:[#allocation2 + $0x79] sm:$0x7f] %v652
        %683 = vst [vmem:[#allocation2 + $0x81] sm:$0xff] %v653
        %684 = vst [vmem:[#allocation2 + $0x89] sm:$0x7f] %v654
        %685 = vst [vmem:[#allocation2 + $0x91] sm:$0xff] %v655
        %686 = vst [vmem:[#allocation2 + $0x99] sm:$0x7f] %v656
        %687 = vst [vmem:[#allocation2 + $0xa1] sm:$0xff] %v657
        %688 = vst [vmem:[#allocation2 + $0xa9] sm:$0x7f] %v658
        %689 = vst [vmem:[#allocation2 + $0xb1] sm:$0xff] %v659
        %690 = vst [vmem:[#allocation2 + $0xb9] sm:$0x7f] %v660
        %691 = vst [vmem:[#allocation2 + $0xc1] sm:$0xff] %v661
        %692 = vst [vmem:[#allocation2 + $0xc9] sm:$0x7f] %v662
        %693 = vst [vmem:[#allocation2 + $0xd1] sm:$0xff] %v663
        %694 = vst [vmem:[#allocation2 + $0xd9] sm:$0x7f] %v664
        %695 = vst [vmem:[#allocation2 + $0xe1] sm:$0xff] %v665
        %696 = vst [vmem:[#allocation2 + $0xe9] sm:$0x7f] %v666
        %v697 = vld [vmem:[%s209] sm:$0xff]
        %v698 = vld [vmem:[%s209 + $0x8] sm:$0xff]
        %v699 = vld [vmem:[%s209 + $0x10] sm:$0xff]
        %v700 = vld [vmem:[%s209 + $0x18] sm:$0xff]
        %v701 = vld [vmem:[%s209 + $0x20] sm:$0xff]
        %v702 = vld [vmem:[%s209 + $0x28] sm:$0xff]
        %v703 = vld [vmem:[%s209 + $0x30] sm:$0xff]
        %v704 = vld [vmem:[%s209 + $0x38] sm:$0xff]
        %v705 = vld [vmem:[%s209 + $0x40] sm:$0xff]
        %v706 = vld [vmem:[%s209 + $0x48] sm:$0xff]
        %v707 = vld [vmem:[%s209 + $0x50] sm:$0xff]
        %v708 = vld [vmem:[%s209 + $0x58] sm:$0xff]
        %v709 = vld [vmem:[%s209 + $0x60] sm:$0xff]
        %v710 = vld [vmem:[%s209 + $0x68] sm:$0xff]
        %v711 = vld [vmem:[%s209 + $0x70] sm:$0xff]
        %v712 = vld [vmem:[%s209 + $0x78] sm:$0xff]
        %v713 = vld [vmem:[%s209 + $0x80] sm:$0xff]
        %v714 = vld [vmem:[%s209 + $0x88] sm:$0xff]
        %v715 = vld [vmem:[%s209 + $0x90] sm:$0xff]
        %v716 = vld [vmem:[%s209 + $0x98] sm:$0xff]
        %v717 = vld [vmem:[%s209 + $0xa0] sm:$0xff]
        %v718 = vld [vmem:[%s209 + $0xa8] sm:$0xff]
        %v719 = vld [vmem:[%s209 + $0xb0] sm:$0xff]
        %v720 = vld [vmem:[%s209 + $0xb8] sm:$0xff]
        %v721 = vld [vmem:[%s209 + $0xc0] sm:$0xff]
        %v722 = vld [vmem:[%s209 + $0xc8] sm:$0xff]
        %v723 = vld [vmem:[%s209 + $0xd0] sm:$0xff]
        %v724 = vld [vmem:[%s209 + $0xd8] sm:$0xff]
        %v725 = vld [vmem:[%s209 + $0xe0] sm:$0xff]
        %v726 = vld [vmem:[%s209 + $0xe8] sm:$0xff]
        %v727 = vld [vmem:[%s209 + $0xf0] sm:$0xff]
        %v728 = vld [vmem:[%s209 + $0xf8] sm:$0xff]
        %v729 = vld [vmem:[#allocation6 + $0x1] sm:$0x1]
        %v730 = vld [vmem:[%s314] sm:$0xff]
        %v731 = vld [vmem:[%s314 + $0x8] sm:$0xff]
        %v732 = vld [vmem:[%s314 + $0x10] sm:$0xff]
        %v733 = vld [vmem:[%s314 + $0x18] sm:$0xff]
        %v734 = vld [vmem:[%s314 + $0x20] sm:$0xff]
        %v735 = vld [vmem:[%s314 + $0x28] sm:$0xff]
        %v736 = vld [vmem:[%s314 + $0x30] sm:$0xff]
        %v737 = vld [vmem:[%s314 + $0x38] sm:$0xff]
        %v738 = vld [vmem:[%s314 + $0x40] sm:$0xff]
        %v739 = vld [vmem:[%s314 + $0x48] sm:$0xff]
        %v740 = vld [vmem:[%s314 + $0x50] sm:$0xff]
        %v741 = vld [vmem:[%s314 + $0x58] sm:$0xff]
        %v742 = vld [vmem:[%s314 + $0x60] sm:$0xff]
        %v743 = vld [vmem:[%s314 + $0x68] sm:$0xff]
        %v744 = vld [vmem:[%s314 + $0x70] sm:$0xff]
        %v745 = vld [vmem:[%s314 + $0x78] sm:$0xff]
        %v746 = vld [vmem:[%s314 + $0x80] sm:$0xff]
        %v747 = vld [vmem:[%s314 + $0x88] sm:$0xff]
        %v748 = vld [vmem:[%s314 + $0x90] sm:$0xff]
        %v749 = vld [vmem:[%s314 + $0x98] sm:$0xff]
        %v750 = vld [vmem:[%s314 + $0xa0] sm:$0xff]
        %v751 = vld [vmem:[%s314 + $0xa8] sm:$0xff]
        %v752 = vld [vmem:[%s314 + $0xb0] sm:$0xff]
        %v753 = vld [vmem:[%s314 + $0xb8] sm:$0xff]
        %v754 = vld [vmem:[%s314 + $0xc0] sm:$0xff]
        %v755 = vld [vmem:[%s314 + $0xc8] sm:$0xff]
        %v756 = vld [vmem:[%s314 + $0xd0] sm:$0xff]
        %v757 = vld [vmem:[%s314 + $0xd8] sm:$0xff]
        %v758 = vld [vmem:[%s314 + $0xe0] sm:$0xff]
        %v759 = vld [vmem:[%s314 + $0xe8] sm:$0xff]
        %v760 = vlaneseq
        %v761 = vshrl.u32 %v760, 7
        %v762 = vsub.s32 0, %v761
        %v763 = vrot.slane %v729, %v762
        %v764 = vmul.f32 %v697, %v763
        %v765 = vmul.f32 %v698, %v763
        %v766 = vmul.f32 %v699, %v763
        %v767 = vmul.f32 %v700, %v763
        %v768 = vmul.f32 %v701, %v763
        %v769 = vmul.f32 %v702, %v763
        %v770 = vmul.f32 %v703, %v763
        %v771 = vmul.f32 %v704, %v763
        %v772 = vmul.f32 %v705, %v763
        %v773 = vmul.f32 %v706, %v763
        %v774 = vmul.f32 %v707, %v763
        %v775 = vmul.f32 %v708, %v763
        %v776 = vmul.f32 %v709, %v763
        %v777 = vmul.f32 %v710, %v763
        %v778 = vmul.f32 %v711, %v763
        %v779 = vmul.f32 %v712, %v763
        %v780 = vmul.f32 %v713, %v763
        %v781 = vmul.f32 %v714, %v763
        %v782 = vmul.f32 %v715, %v763
        %v783 = vmul.f32 %v716, %v763
        %v784 = vmul.f32 %v717, %v763
        %v785 = vmul.f32 %v718, %v763
        %v786 = vmul.f32 %v719, %v763
        %v787 = vmul.f32 %v720, %v763
        %v788 = vmul.f32 %v721, %v763
        %v789 = vmul.f32 %v722, %v763
        %v790 = vmul.f32 %v723, %v763
        %v791 = vmul.f32 %v724, %v763
        %v792 = vmul.f32 %v725, %v763
        %v793 = vmul.f32 %v726, %v763
        %v794 = vadd.f32 %v730, %v764
        %v795 = vadd.f32 %v731, %v765
        %v796 = vadd.f32 %v732, %v766
        %v797 = vadd.f32 %v733, %v767
        %v798 = vadd.f32 %v734, %v768
        %v799 = vadd.f32 %v735, %v769
        %v800 = vadd.f32 %v736, %v770
        %v801 = vadd.f32 %v737, %v771
        %v802 = vadd.f32 %v738, %v772
        %v803 = vadd.f32 %v739, %v773
        %v804 = vadd.f32 %v740, %v774
        %v805 = vadd.f32 %v741, %v775
        %v806 = vadd.f32 %v742, %v776
        %v807 = vadd.f32 %v743, %v777
        %v808 = vadd.f32 %v744, %v778
        %v809 = vadd.f32 %v745, %v779
        %v810 = vadd.f32 %v746, %v780
        %v811 = vadd.f32 %v747, %v781
        %v812 = vadd.f32 %v748, %v782
        %v813 = vadd.f32 %v749, %v783
        %v814 = vadd.f32 %v750, %v784
        %v815 = vadd.f32 %v751, %v785
        %v816 = vadd.f32 %v752, %v786
        %v817 = vadd.f32 %v753, %v787
        %v818 = vadd.f32 %v754, %v788
        %v819 = vadd.f32 %v755, %v789
        %v820 = vadd.f32 %v756, %v790
        %v821 = vadd.f32 %v757, %v791
        %v822 = vadd.f32 %v758, %v792
        %v823 = vadd.f32 %v759, %v793
        %824 = vst [vmem:[%s314] sm:$0xff] %v794
        %825 = vst [vmem:[%s314 + $0x8] sm:$0xff] %v795
        %826 = vst [vmem:[%s314 + $0x10] sm:$0xff] %v796
        %827 = vst [vmem:[%s314 + $0x18] sm:$0xff] %v797
        %828 = vst [vmem:[%s314 + $0x20] sm:$0xff] %v798
        %829 = vst [vmem:[%s314 + $0x28] sm:$0xff] %v799
        %830 = vst [vmem:[%s314 + $0x30] sm:$0xff] %v800
        %831 = vst [vmem:[%s314 + $0x38] sm:$0xff] %v801
        %832 = vst [vmem:[%s314 + $0x40] sm:$0xff] %v802
        %833 = vst [vmem:[%s314 + $0x48] sm:$0xff] %v803
        %834 = vst [vmem:[%s314 + $0x50] sm:$0xff] %v804
        %835 = vst [vmem:[%s314 + $0x58] sm:$0xff] %v805
        %836 = vst [vmem:[%s314 + $0x60] sm:$0xff] %v806
        %837 = vst [vmem:[%s314 + $0x68] sm:$0xff] %v807
        %838 = vst [vmem:[%s314 + $0x70] sm:$0xff] %v808
        %839 = vst [vmem:[%s314 + $0x78] sm:$0xff] %v809
        %840 = vst [vmem:[%s314 + $0x80] sm:$0xff] %v810
        %841 = vst [vmem:[%s314 + $0x88] sm:$0xff] %v811
        %842 = vst [vmem:[%s314 + $0x90] sm:$0xff] %v812
        %843 = vst [vmem:[%s314 + $0x98] sm:$0xff] %v813
        %844 = vst [vmem:[%s314 + $0xa0] sm:$0xff] %v814
        %845 = vst [vmem:[%s314 + $0xa8] sm:$0xff] %v815
        %846 = vst [vmem:[%s314 + $0xb0] sm:$0xff] %v816
        %847 = vst [vmem:[%s314 + $0xb8] sm:$0xff] %v817
        %848 = vst [vmem:[%s314 + $0xc0] sm:$0xff] %v818
        %849 = vst [vmem:[%s314 + $0xc8] sm:$0xff] %v819
        %850 = vst [vmem:[%s314 + $0xd0] sm:$0xff] %v820
        %851 = vst [vmem:[%s314 + $0xd8] sm:$0xff] %v821
        %852 = vst [vmem:[%s314 + $0xe0] sm:$0xff] %v822
        %853 = vst [vmem:[%s314 + $0xe8] sm:$0xff] %v823
        %v854 = vld [vmem:[#allocation6 + $0x4] sm:$0x1]
        %v855 = vld [vmem:[#allocation2] sm:$0xff]
        %v856 = vld [vmem:[#allocation2 + $0x8] sm:$0xff]
        %v857 = vld [vmem:[#allocation2 + $0x10] sm:$0xff]
        %v858 = vld [vmem:[#allocation2 + $0x18] sm:$0xff]
        %v859 = vld [vmem:[#allocation2 + $0x20] sm:$0xff]
        %v860 = vld [vmem:[#allocation2 + $0x28] sm:$0xff]
        %v861 = vld [vmem:[#allocation2 + $0x30] sm:$0xff]
        %v862 = vld [vmem:[#allocation2 + $0x38] sm:$0xff]
        %v863 = vld [vmem:[#allocation2 + $0x40] sm:$0xff]
        %v864 = vld [vmem:[#allocation2 + $0x48] sm:$0xff]
        %v865 = vld [vmem:[#allocation2 + $0x50] sm:$0xff]
        %v866 = vld [vmem:[#allocation2 + $0x58] sm:$0xff]
        %v867 = vld [vmem:[#allocation2 + $0x60] sm:$0xff]
        %v868 = vld [vmem:[#allocation2 + $0x68] sm:$0xff]
        %v869 = vld [vmem:[#allocation2 + $0x70] sm:$0xff]
        %v870 = vld [vmem:[#allocation2 + $0x78] sm:$0xff]
        %v871 = vld [vmem:[#allocation2 + $0x80] sm:$0xff]
        %v872 = vld [vmem:[#allocation2 + $0x88] sm:$0xff]
        %v873 = vld [vmem:[#allocation2 + $0x90] sm:$0xff]
        %v874 = vld [vmem:[#allocation2 + $0x98] sm:$0xff]
        %v875 = vld [vmem:[#allocation2 + $0xa0] sm:$0xff]
        %v876 = vld [vmem:[#allocation2 + $0xa8] sm:$0xff]
        %v877 = vld [vmem:[#allocation2 + $0xb0] sm:$0xff]
        %v878 = vld [vmem:[#allocation2 + $0xb8] sm:$0xff]
        %v879 = vld [vmem:[#allocation2 + $0xc0] sm:$0xff]
        %v880 = vld [vmem:[#allocation2 + $0xc8] sm:$0xff]
        %v881 = vld [vmem:[#allocation2 + $0xd0] sm:$0xff]
        %v882 = vld [vmem:[#allocation2 + $0xd8] sm:$0xff]
        %v883 = vld [vmem:[#allocation2 + $0xe0] sm:$0xff]
        %v884 = vld [vmem:[#allocation2 + $0xe8] sm:$0xff]
        %v885 = vld [vmem:[#allocation2 + $0xf0] sm:$0xff]
        %v886 = vld [vmem:[#allocation2 + $0xf8] sm:$0xff]
        %v887 = vlaneseq
        %v888 = vshrl.u32 %v887, 7
        %v889 = vsub.s32 0, %v888
        %v890 = vrot.slane %v854, %v889
        %v891 = vmul.f32 %v697, %v890
        %v892 = vmul.f32 %v698, %v890
        %v893 = vmul.f32 %v699, %v890
        %v894 = vmul.f32 %v700, %v890
        %v895 = vmul.f32 %v701, %v890
        %v896 = vmul.f32 %v702, %v890
        %v897 = vmul.f32 %v703, %v890
        %v898 = vmul.f32 %v704, %v890
        %v899 = vmul.f32 %v705, %v890
        %v900 = vmul.f32 %v706, %v890
        %v901 = vmul.f32 %v707, %v890
        %v902 = vmul.f32 %v708, %v890
        %v903 = vmul.f32 %v709, %v890
        %v904 = vmul.f32 %v710, %v890
        %v905 = vmul.f32 %v711, %v890
        %v906 = vmul.f32 %v712, %v890
        %v907 = vmul.f32 %v713, %v890
        %v908 = vmul.f32 %v714, %v890
        %v909 = vmul.f32 %v715, %v890
        %v910 = vmul.f32 %v716, %v890
        %v911 = vmul.f32 %v717, %v890
        %v912 = vmul.f32 %v718, %v890
        %v913 = vmul.f32 %v719, %v890
        %v914 = vmul.f32 %v720, %v890
        %v915 = vmul.f32 %v721, %v890
        %v916 = vmul.f32 %v722, %v890
        %v917 = vmul.f32 %v723, %v890
        %v918 = vmul.f32 %v724, %v890
        %v919 = vmul.f32 %v725, %v890
        %v920 = vmul.f32 %v726, %v890
        %v921 = vmul.f32 %v727, %v890
        %v922 = vmul.f32 %v728, %v890
        %v923 = vadd.f32 %v855, %v891
        %v924 = vadd.f32 %v856, %v892
        %v925 = vadd.f32 %v857, %v893
        %v926 = vadd.f32 %v858, %v894
        %v927 = vadd.f32 %v859, %v895
        %v928 = vadd.f32 %v860, %v896
        %v929 = vadd.f32 %v861, %v897
        %v930 = vadd.f32 %v862, %v898
        %v931 = vadd.f32 %v863, %v899
        %v932 = vadd.f32 %v864, %v900
        %v933 = vadd.f32 %v865, %v901
        %v934 = vadd.f32 %v866, %v902
        %v935 = vadd.f32 %v867, %v903
        %v936 = vadd.f32 %v868, %v904
        %v937 = vadd.f32 %v869, %v905
        %v938 = vadd.f32 %v870, %v906
        %v939 = vadd.f32 %v871, %v907
        %v940 = vadd.f32 %v872, %v908
        %v941 = vadd.f32 %v873, %v909
        %v942 = vadd.f32 %v874, %v910
        %v943 = vadd.f32 %v875, %v911
        %v944 = vadd.f32 %v876, %v912
        %v945 = vadd.f32 %v877, %v913
        %v946 = vadd.f32 %v878, %v914
        %v947 = vadd.f32 %v879, %v915
        %v948 = vadd.f32 %v880, %v916
        %v949 = vadd.f32 %v881, %v917
        %v950 = vadd.f32 %v882, %v918
        %v951 = vadd.f32 %v883, %v919
        %v952 = vadd.f32 %v884, %v920
        %v953 = vadd.f32 %v885, %v921
        %v954 = vadd.f32 %v886, %v922
        %955 = vst [vmem:[#allocation2] sm:$0xff] %v923
        %956 = vst [vmem:[#allocation2 + $0x8] sm:$0xff] %v924
        %957 = vst [vmem:[#allocation2 + $0x10] sm:$0xff] %v925
        %958 = vst [vmem:[#allocation2 + $0x18] sm:$0xff] %v926
        %959 = vst [vmem:[#allocation2 + $0x20] sm:$0xff] %v927
        %960 = vst [vmem:[#allocation2 + $0x28] sm:$0xff] %v928
        %961 = vst [vmem:[#allocation2 + $0x30] sm:$0xff] %v929
        %962 = vst [vmem:[#allocation2 + $0x38] sm:$0xff] %v930
        %963 = vst [vmem:[#allocation2 + $0x40] sm:$0xff] %v931
        %964 = vst [vmem:[#allocation2 + $0x48] sm:$0xff] %v932
        %965 = vst [vmem:[#allocation2 + $0x50] sm:$0xff] %v933
        %966 = vst [vmem:[#allocation2 + $0x58] sm:$0xff] %v934
        %967 = vst [vmem:[#allocation2 + $0x60] sm:$0xff] %v935
        %968 = vst [vmem:[#allocation2 + $0x68] sm:$0xff] %v936
        %969 = vst [vmem:[#allocation2 + $0x70] sm:$0xff] %v937
        %970 = vst [vmem:[#allocation2 + $0x78] sm:$0xff] %v938
        %971 = vst [vmem:[#allocation2 + $0x80] sm:$0xff] %v939
        %972 = vst [vmem:[#allocation2 + $0x88] sm:$0xff] %v940
        %973 = vst [vmem:[#allocation2 + $0x90] sm:$0xff] %v941
        %974 = vst [vmem:[#allocation2 + $0x98] sm:$0xff] %v942
        %975 = vst [vmem:[#allocation2 + $0xa0] sm:$0xff] %v943
        %976 = vst [vmem:[#allocation2 + $0xa8] sm:$0xff] %v944
        %977 = vst [vmem:[#allocation2 + $0xb0] sm:$0xff] %v945
        %978 = vst [vmem:[#allocation2 + $0xb8] sm:$0xff] %v946
        %979 = vst [vmem:[#allocation2 + $0xc0] sm:$0xff] %v947
        %980 = vst [vmem:[#allocation2 + $0xc8] sm:$0xff] %v948
        %981 = vst [vmem:[#allocation2 + $0xd0] sm:$0xff] %v949
        %982 = vst [vmem:[#allocation2 + $0xd8] sm:$0xff] %v950
        %983 = vst [vmem:[#allocation2 + $0xe0] sm:$0xff] %v951
        %984 = vst [vmem:[#allocation2 + $0xe8] sm:$0xff] %v952
        %985 = vst [vmem:[#allocation2 + $0xf0] sm:$0xff] %v953
        %986 = vst [vmem:[#allocation2 + $0xf8] sm:$0xff] %v954
        %v987 = vld [vmem:[#allocation6 + $0x7] sm:$0x1]
        %v988 = vld [vmem:[#allocation2] sm:$0xff]
        %v989 = vld [vmem:[#allocation2 + $0x8] sm:$0xff]
        %v990 = vld [vmem:[#allocation2 + $0x10] sm:$0xff]
        %v991 = vld [vmem:[#allocation2 + $0x18] sm:$0xff]
        %v992 = vld [vmem:[#allocation2 + $0x20] sm:$0xff]
        %v993 = vld [vmem:[#allocation2 + $0x28] sm:$0xff]
        %v994 = vld [vmem:[#allocation2 + $0x30] sm:$0xff]
        %v995 = vld [vmem:[#allocation2 + $0x38] sm:$0xff]
        %v996 = vld [vmem:[#allocation2 + $0x40] sm:$0xff]
        %v997 = vld [vmem:[#allocation2 + $0x48] sm:$0xff]
        %v998 = vld [vmem:[#allocation2 + $0x50] sm:$0xff]
        %v999 = vld [vmem:[#allocation2 + $0x58] sm:$0xff]
        %v1000 = vld [vmem:[#allocation2 + $0x60] sm:$0xff]
        %v1001 = vld [vmem:[#allocation2 + $0x68] sm:$0xff]
        %v1002 = vld [vmem:[#allocation2 + $0x70] sm:$0xff]
        %v1003 = vld [vmem:[#allocation2 + $0x78] sm:$0xff]
        %v1004 = vld [vmem:[#allocation2 + $0x80] sm:$0xff]
        %v1005 = vld [vmem:[#allocation2 + $0x88] sm:$0xff]
        %v1006 = vld [vmem:[#allocation2 + $0x90] sm:$0xff]
        %v1007 = vld [vmem:[#allocation2 + $0x98] sm:$0xff]
        %v1008 = vld [vmem:[#allocation2 + $0xa0] sm:$0xff]
        %v1009 = vld [vmem:[#allocation2 + $0xa8] sm:$0xff]
        %v1010 = vld [vmem:[#allocation2 + $0xb0] sm:$0xff]
        %v1011 = vld [vmem:[#allocation2 + $0xb8] sm:$0xff]
        %v1012 = vld [vmem:[#allocation2 + $0xc0] sm:$0xff]
        %v1013 = vld [vmem:[#allocation2 + $0xc8] sm:$0xff]
        %v1014 = vld [vmem:[#allocation2 + $0xd0] sm:$0xff]
        %v1015 = vld [vmem:[#allocation2 + $0xd8] sm:$0xff]
        %v1016 = vld [vmem:[#allocation2 + $0xe0] sm:$0xff]
        %v1017 = vld [vmem:[#allocation2 + $0xe8] sm:$0xff]
        %v1018 = vlaneseq
        %v1019 = vshrl.u32 %v1018, 7
        %v1020 = vsub.s32 0, %v1019
        %v1021 = vrot.slane %v987, %v1020
        %v1022 = vmul.f32 %v699, %v1021
        %v1023 = vmul.f32 %v700, %v1021
        %v1024 = vmul.f32 %v701, %v1021
        %v1025 = vmul.f32 %v702, %v1021
        %v1026 = vmul.f32 %v703, %v1021
        %v1027 = vmul.f32 %v704, %v1021
        %v1028 = vmul.f32 %v705, %v1021
        %v1029 = vmul.f32 %v706, %v1021
        %v1030 = vmul.f32 %v707, %v1021
        %v1031 = vmul.f32 %v708, %v1021
        %v1032 = vmul.f32 %v709, %v1021
        %v1033 = vmul.f32 %v710, %v1021
        %v1034 = vmul.f32 %v711, %v1021
        %v1035 = vmul.f32 %v712, %v1021
        %v1036 = vmul.f32 %v713, %v1021
        %v1037 = vmul.f32 %v714, %v1021
        %v1038 = vmul.f32 %v715, %v1021
        %v1039 = vmul.f32 %v716, %v1021
        %v1040 = vmul.f32 %v717, %v1021
        %v1041 = vmul.f32 %v718, %v1021
        %v1042 = vmul.f32 %v719, %v1021
        %v1043 = vmul.f32 %v720, %v1021
        %v1044 = vmul.f32 %v721, %v1021
        %v1045 = vmul.f32 %v722, %v1021
        %v1046 = vmul.f32 %v723, %v1021
        %v1047 = vmul.f32 %v724, %v1021
        %v1048 = vmul.f32 %v725, %v1021
        %v1049 = vmul.f32 %v726, %v1021
        %v1050 = vmul.f32 %v727, %v1021
        %v1051 = vmul.f32 %v728, %v1021
        %v1052 = vadd.f32 %v988, %v1022
        %v1053 = vadd.f32 %v989, %v1023
        %v1054 = vadd.f32 %v990, %v1024
        %v1055 = vadd.f32 %v991, %v1025
        %v1056 = vadd.f32 %v992, %v1026
        %v1057 = vadd.f32 %v993, %v1027
        %v1058 = vadd.f32 %v994, %v1028
        %v1059 = vadd.f32 %v995, %v1029
        %v1060 = vadd.f32 %v996, %v1030
        %v1061 = vadd.f32 %v997, %v1031
        %v1062 = vadd.f32 %v998, %v1032
        %v1063 = vadd.f32 %v999, %v1033
        %v1064 = vadd.f32 %v1000, %v1034
        %v1065 = vadd.f32 %v1001, %v1035
        %v1066 = vadd.f32 %v1002, %v1036
        %v1067 = vadd.f32 %v1003, %v1037
        %v1068 = vadd.f32 %v1004, %v1038
        %v1069 = vadd.f32 %v1005, %v1039
        %v1070 = vadd.f32 %v1006, %v1040
        %v1071 = vadd.f32 %v1007, %v1041
        %v1072 = vadd.f32 %v1008, %v1042
        %v1073 = vadd.f32 %v1009, %v1043
        %v1074 = vadd.f32 %v1010, %v1044
        %v1075 = vadd.f32 %v1011, %v1045
        %v1076 = vadd.f32 %v1012, %v1046
        %v1077 = vadd.f32 %v1013, %v1047
        %v1078 = vadd.f32 %v1014, %v1048
        %v1079 = vadd.f32 %v1015, %v1049
        %v1080 = vadd.f32 %v1016, %v1050
        %v1081 = vadd.f32 %v1017, %v1051
        %1082 = vst [vmem:[#allocation2] sm:$0xff] %v1052
        %1083 = vst [vmem:[#allocation2 + $0x8] sm:$0xff] %v1053
        %1084 = vst [vmem:[#allocation2 + $0x10] sm:$0xff] %v1054
        %1085 = vst [vmem:[#allocation2 + $0x18] sm:$0xff] %v1055
        %1086 = vst [vmem:[#allocation2 + $0x20] sm:$0xff] %v1056
        %1087 = vst [vmem:[#allocation2 + $0x28] sm:$0xff] %v1057
        %1088 = vst [vmem:[#allocation2 + $0x30] sm:$0xff] %v1058
        %1089 = vst [vmem:[#allocation2 + $0x38] sm:$0xff] %v1059
        %1090 = vst [vmem:[#allocation2 + $0x40] sm:$0xff] %v1060
        %1091 = vst [vmem:[#allocation2 + $0x48] sm:$0xff] %v1061
        %1092 = vst [vmem:[#allocation2 + $0x50] sm:$0xff] %v1062
        %1093 = vst [vmem:[#allocation2 + $0x58] sm:$0xff] %v1063
        %1094 = vst [vmem:[#allocation2 + $0x60] sm:$0xff] %v1064
        %1095 = vst [vmem:[#allocation2 + $0x68] sm:$0xff] %v1065
        %1096 = vst [vmem:[#allocation2 + $0x70] sm:$0xff] %v1066
        %1097 = vst [vmem:[#allocation2 + $0x78] sm:$0xff] %v1067
        %1098 = vst [vmem:[#allocation2 + $0x80] sm:$0xff] %v1068
        %1099 = vst [vmem:[#allocation2 + $0x88] sm:$0xff] %v1069
        %1100 = vst [vmem:[#allocation2 + $0x90] sm:$0xff] %v1070
        %1101 = vst [vmem:[#allocation2 + $0x98] sm:$0xff] %v1071
        %1102 = vst [vmem:[#allocation2 + $0xa0] sm:$0xff] %v1072
        %1103 = vst [vmem:[#allocation2 + $0xa8] sm:$0xff] %v1073
        %1104 = vst [vmem:[#allocation2 + $0xb0] sm:$0xff] %v1074
        %1105 = vst [vmem:[#allocation2 + $0xb8] sm:$0xff] %v1075
        %1106 = vst [vmem:[#allocation2 + $0xc0] sm:$0xff] %v1076
        %1107 = vst [vmem:[#allocation2 + $0xc8] sm:$0xff] %v1077
        %1108 = vst [vmem:[#allocation2 + $0xd0] sm:$0xff] %v1078
        %1109 = vst [vmem:[#allocation2 + $0xd8] sm:$0xff] %v1079
        %1110 = vst [vmem:[#allocation2 + $0xe0] sm:$0xff] %v1080
        %1111 = vst [vmem:[#allocation2 + $0xe8] sm:$0xff] %v1081
        %v1112 = vld [vmem:[%s209 + $0x1] sm:$0xff]
        %v1113 = vld [vmem:[%s209 + $0x9] sm:$0x7f]
        %v1114 = vld [vmem:[%s209 + $0x11] sm:$0xff]
        %v1115 = vld [vmem:[%s209 + $0x19] sm:$0x7f]
        %v1116 = vld [vmem:[%s209 + $0x21] sm:$0xff]
        %v1117 = vld [vmem:[%s209 + $0x29] sm:$0x7f]
        %v1118 = vld [vmem:[%s209 + $0x31] sm:$0xff]
        %v1119 = vld [vmem:[%s209 + $0x39] sm:$0x7f]
        %v1120 = vld [vmem:[%s209 + $0x41] sm:$0xff]
        %v1121 = vld [vmem:[%s209 + $0x49] sm:$0x7f]
        %v1122 = vld [vmem:[%s209 + $0x51] sm:$0xff]
        %v1123 = vld [vmem:[%s209 + $0x59] sm:$0x7f]
        %v1124 = vld [vmem:[%s209 + $0x61] sm:$0xff]
        %v1125 = vld [vmem:[%s209 + $0x69] sm:$0x7f]
        %v1126 = vld [vmem:[%s209 + $0x71] sm:$0xff]
        %v1127 = vld [vmem:[%s209 + $0x79] sm:$0x7f]
        %v1128 = vld [vmem:[%s209 + $0x81] sm:$0xff]
        %v1129 = vld [vmem:[%s209 + $0x89] sm:$0x7f]
        %v1130 = vld [vmem:[%s209 + $0x91] sm:$0xff]
        %v1131 = vld [vmem:[%s209 + $0x99] sm:$0x7f]
        %v1132 = vld [vmem:[%s209 + $0xa1] sm:$0xff]
        %v1133 = vld [vmem:[%s209 + $0xa9] sm:$0x7f]
        %v1134 = vld [vmem:[%s209 + $0xb1] sm:$0xff]
        %v1135 = vld [vmem:[%s209 + $0xb9] sm:$0x7f]
        %v1136 = vld [vmem:[%s209 + $0xc1] sm:$0xff]
        %v1137 = vld [vmem:[%s209 + $0xc9] sm:$0x7f]
        %v1138 = vld [vmem:[%s209 + $0xd1] sm:$0xff]
        %v1139 = vld [vmem:[%s209 + $0xd9] sm:$0x7f]
        %v1140 = vld [vmem:[%s209 + $0xe1] sm:$0xff]
        %v1141 = vld [vmem:[%s209 + $0xe9] sm:$0x7f]
        %v1142 = vld [vmem:[%s209 + $0xf1] sm:$0xff]
        %v1143 = vld [vmem:[%s209 + $0xf9] sm:$0x7f]
        %v1144 = vld [vmem:[#allocation6 + $0x2] sm:$0x1]
        %v1145 = vld [vmem:[%s314] sm:$0xff]
        %v1146 = vld [vmem:[%s314 + $0x8] sm:$0x7f]
        %v1147 = vld [vmem:[%s314 + $0x10] sm:$0xff]
        %v1148 = vld [vmem:[%s314 + $0x18] sm:$0x7f]
        %v1149 = vld [vmem:[%s314 + $0x20] sm:$0xff]
        %v1150 = vld [vmem:[%s314 + $0x28] sm:$0x7f]
        %v1151 = vld [vmem:[%s314 + $0x30] sm:$0xff]
        %v1152 = vld [vmem:[%s314 + $0x38] sm:$0x7f]
        %v1153 = vld [vmem:[%s314 + $0x40] sm:$0xff]
        %v1154 = vld [vmem:[%s314 + $0x48] sm:$0x7f]
        %v1155 = vld [vmem:[%s314 + $0x50] sm:$0xff]
        %v1156 = vld [vmem:[%s314 + $0x58] sm:$0x7f]
        %v1157 = vld [vmem:[%s314 + $0x60] sm:$0xff]
        %v1158 = vld [vmem:[%s314 + $0x68] sm:$0x7f]
        %v1159 = vld [vmem:[%s314 + $0x70] sm:$0xff]
        %v1160 = vld [vmem:[%s314 + $0x78] sm:$0x7f]
        %v1161 = vld [vmem:[%s314 + $0x80] sm:$0xff]
        %v1162 = vld [vmem:[%s314 + $0x88] sm:$0x7f]
        %v1163 = vld [vmem:[%s314 + $0x90] sm:$0xff]
        %v1164 = vld [vmem:[%s314 + $0x98] sm:$0x7f]
        %v1165 = vld [vmem:[%s314 + $0xa0] sm:$0xff]
        %v1166 = vld [vmem:[%s314 + $0xa8] sm:$0x7f]
        %v1167 = vld [vmem:[%s314 + $0xb0] sm:$0xff]
        %v1168 = vld [vmem:[%s314 + $0xb8] sm:$0x7f]
        %v1169 = vld [vmem:[%s314 + $0xc0] sm:$0xff]
        %v1170 = vld [vmem:[%s314 + $0xc8] sm:$0x7f]
        %v1171 = vld [vmem:[%s314 + $0xd0] sm:$0xff]
        %v1172 = vld [vmem:[%s314 + $0xd8] sm:$0x7f]
        %v1173 = vld [vmem:[%s314 + $0xe0] sm:$0xff]
        %v1174 = vld [vmem:[%s314 + $0xe8] sm:$0x7f]
        %v1175 = vlaneseq
        %v1176 = vshrl.u32 %v1175, 7
        %v1177 = vsub.s32 0, %v1176
        %v1178 = vrot.slane %v1144, %v1177
        %v1179 = vmul.f32 %v1112, %v1178
        %v1180 = vmul.f32 %v1113, %v1178
        %v1181 = vmul.f32 %v1114, %v1178
        %v1182 = vmul.f32 %v1115, %v1178
        %v1183 = vmul.f32 %v1116, %v1178
        %v1184 = vmul.f32 %v1117, %v1178
        %v1185 = vmul.f32 %v1118, %v1178
        %v1186 = vmul.f32 %v1119, %v1178
        %v1187 = vmul.f32 %v1120, %v1178
        %v1188 = vmul.f32 %v1121, %v1178
        %v1189 = vmul.f32 %v1122, %v1178
        %v1190 = vmul.f32 %v1123, %v1178
        %v1191 = vmul.f32 %v1124, %v1178
        %v1192 = vmul.f32 %v1125, %v1178
        %v1193 = vmul.f32 %v1126, %v1178
        %v1194 = vmul.f32 %v1127, %v1178
        %v1195 = vmul.f32 %v1128, %v1178
        %v1196 = vmul.f32 %v1129, %v1178
        %v1197 = vmul.f32 %v1130, %v1178
        %v1198 = vmul.f32 %v1131, %v1178
        %v1199 = vmul.f32 %v1132, %v1178
        %v1200 = vmul.f32 %v1133, %v1178
        %v1201 = vmul.f32 %v1134, %v1178
        %v1202 = vmul.f32 %v1135, %v1178
        %v1203 = vmul.f32 %v1136, %v1178
        %v1204 = vmul.f32 %v1137, %v1178
        %v1205 = vmul.f32 %v1138, %v1178
        %v1206 = vmul.f32 %v1139, %v1178
        %v1207 = vmul.f32 %v1140, %v1178
        %v1208 = vmul.f32 %v1141, %v1178
        %v1209 = vadd.f32 %v1145, %v1179
        %v1210 = vadd.f32 %v1146, %v1180
        %v1211 = vadd.f32 %v1147, %v1181
        %v1212 = vadd.f32 %v1148, %v1182
        %v1213 = vadd.f32 %v1149, %v1183
        %v1214 = vadd.f32 %v1150, %v1184
        %v1215 = vadd.f32 %v1151, %v1185
        %v1216 = vadd.f32 %v1152, %v1186
        %v1217 = vadd.f32 %v1153, %v1187
        %v1218 = vadd.f32 %v1154, %v1188
        %v1219 = vadd.f32 %v1155, %v1189
        %v1220 = vadd.f32 %v1156, %v1190
        %v1221 = vadd.f32 %v1157, %v1191
        %v1222 = vadd.f32 %v1158, %v1192
        %v1223 = vadd.f32 %v1159, %v1193
        %v1224 = vadd.f32 %v1160, %v1194
        %v1225 = vadd.f32 %v1161, %v1195
        %v1226 = vadd.f32 %v1162, %v1196
        %v1227 = vadd.f32 %v1163, %v1197
        %v1228 = vadd.f32 %v1164, %v1198
        %v1229 = vadd.f32 %v1165, %v1199
        %v1230 = vadd.f32 %v1166, %v1200
        %v1231 = vadd.f32 %v1167, %v1201
        %v1232 = vadd.f32 %v1168, %v1202
        %v1233 = vadd.f32 %v1169, %v1203
        %v1234 = vadd.f32 %v1170, %v1204
        %v1235 = vadd.f32 %v1171, %v1205
        %v1236 = vadd.f32 %v1172, %v1206
        %v1237 = vadd.f32 %v1173, %v1207
        %v1238 = vadd.f32 %v1174, %v1208
        %1239 = vst [vmem:[%s314] sm:$0xff] %v1209
        %1240 = vst [vmem:[%s314 + $0x8] sm:$0x7f] %v1210
        %1241 = vst [vmem:[%s314 + $0x10] sm:$0xff] %v1211
        %1242 = vst [vmem:[%s314 + $0x18] sm:$0x7f] %v1212
        %1243 = vst [vmem:[%s314 + $0x20] sm:$0xff] %v1213
        %1244 = vst [vmem:[%s314 + $0x28] sm:$0x7f] %v1214
        %1245 = vst [vmem:[%s314 + $0x30] sm:$0xff] %v1215
        %1246 = vst [vmem:[%s314 + $0x38] sm:$0x7f] %v1216
        %1247 = vst [vmem:[%s314 + $0x40] sm:$0xff] %v1217
        %1248 = vst [vmem:[%s314 + $0x48] sm:$0x7f] %v1218
        %1249 = vst [vmem:[%s314 + $0x50] sm:$0xff] %v1219
        %1250 = vst [vmem:[%s314 + $0x58] sm:$0x7f] %v1220
        %1251 = vst [vmem:[%s314 + $0x60] sm:$0xff] %v1221
        %1252 = vst [vmem:[%s314 + $0x68] sm:$0x7f] %v1222
        %1253 = vst [vmem:[%s314 + $0x70] sm:$0xff] %v1223
        %1254 = vst [vmem:[%s314 + $0x78] sm:$0x7f] %v1224
        %1255 = vst [vmem:[%s314 + $0x80] sm:$0xff] %v1225
        %1256 = vst [vmem:[%s314 + $0x88] sm:$0x7f] %v1226
        %1257 = vst [vmem:[%s314 + $0x90] sm:$0xff] %v1227
        %1258 = vst [vmem:[%s314 + $0x98] sm:$0x7f] %v1228
        %1259 = vst [vmem:[%s314 + $0xa0] sm:$0xff] %v1229
        %1260 = vst [vmem:[%s314 + $0xa8] sm:$0x7f] %v1230
        %1261 = vst [vmem:[%s314 + $0xb0] sm:$0xff] %v1231
        %1262 = vst [vmem:[%s314 + $0xb8] sm:$0x7f] %v1232
        %1263 = vst [vmem:[%s314 + $0xc0] sm:$0xff] %v1233
        %1264 = vst [vmem:[%s314 + $0xc8] sm:$0x7f] %v1234
        %1265 = vst [vmem:[%s314 + $0xd0] sm:$0xff] %v1235
        %1266 = vst [vmem:[%s314 + $0xd8] sm:$0x7f] %v1236
        %1267 = vst [vmem:[%s314 + $0xe0] sm:$0xff] %v1237
        %1268 = vst [vmem:[%s314 + $0xe8] sm:$0x7f] %v1238
        %v1269 = vld [vmem:[#allocation6 + $0x5] sm:$0x1]
        %v1270 = vld [vmem:[#allocation2] sm:$0xff]
        %v1271 = vld [vmem:[#allocation2 + $0x8] sm:$0x7f]
        %v1272 = vld [vmem:[#allocation2 + $0x10] sm:$0xff]
        %v1273 = vld [vmem:[#allocation2 + $0x18] sm:$0x7f]
        %v1274 = vld [vmem:[#allocation2 + $0x20] sm:$0xff]
        %v1275 = vld [vmem:[#allocation2 + $0x28] sm:$0x7f]
        %v1276 = vld [vmem:[#allocation2 + $0x30] sm:$0xff]
        %v1277 = vld [vmem:[#allocation2 + $0x38] sm:$0x7f]
        %v1278 = vld [vmem:[#allocation2 + $0x40] sm:$0xff]
        %v1279 = vld [vmem:[#allocation2 + $0x48] sm:$0x7f]
        %v1280 = vld [vmem:[#allocation2 + $0x50] sm:$0xff]
        %v1281 = vld [vmem:[#allocation2 + $0x58] sm:$0x7f]
        %v1282 = vld [vmem:[#allocation2 + $0x60] sm:$0xff]
        %v1283 = vld [vmem:[#allocation2 + $0x68] sm:$0x7f]
        %v1284 = vld [vmem:[#allocation2 + $0x70] sm:$0xff]
        %v1285 = vld [vmem:[#allocation2 + $0x78] sm:$0x7f]
        %v1286 = vld [vmem:[#allocation2 + $0x80] sm:$0xff]
        %v1287 = vld [vmem:[#allocation2 + $0x88] sm:$0x7f]
        %v1288 = vld [vmem:[#allocation2 + $0x90] sm:$0xff]
        %v1289 = vld [vmem:[#allocation2 + $0x98] sm:$0x7f]
        %v1290 = vld [vmem:[#allocation2 + $0xa0] sm:$0xff]
        %v1291 = vld [vmem:[#allocation2 + $0xa8] sm:$0x7f]
        %v1292 = vld [vmem:[#allocation2 + $0xb0] sm:$0xff]
        %v1293 = vld [vmem:[#allocation2 + $0xb8] sm:$0x7f]
        %v1294 = vld [vmem:[#allocation2 + $0xc0] sm:$0xff]
        %v1295 = vld [vmem:[#allocation2 + $0xc8] sm:$0x7f]
        %v1296 = vld [vmem:[#allocation2 + $0xd0] sm:$0xff]
        %v1297 = vld [vmem:[#allocation2 + $0xd8] sm:$0x7f]
        %v1298 = vld [vmem:[#allocation2 + $0xe0] sm:$0xff]
        %v1299 = vld [vmem:[#allocation2 + $0xe8] sm:$0x7f]
        %v1300 = vld [vmem:[#allocation2 + $0xf0] sm:$0xff]
        %v1301 = vld [vmem:[#allocation2 + $0xf8] sm:$0x7f]
        %v1302 = vlaneseq
        %v1303 = vshrl.u32 %v1302, 7
        %v1304 = vsub.s32 0, %v1303
        %v1305 = vrot.slane %v1269, %v1304
        %v1306 = vmul.f32 %v1112, %v1305
        %v1307 = vmul.f32 %v1113, %v1305
        %v1308 = vmul.f32 %v1114, %v1305
        %v1309 = vmul.f32 %v1115, %v1305
        %v1310 = vmul.f32 %v1116, %v1305
        %v1311 = vmul.f32 %v1117, %v1305
        %v1312 = vmul.f32 %v1118, %v1305
        %v1313 = vmul.f32 %v1119, %v1305
        %v1314 = vmul.f32 %v1120, %v1305
        %v1315 = vmul.f32 %v1121, %v1305
        %v1316 = vmul.f32 %v1122, %v1305
        %v1317 = vmul.f32 %v1123, %v1305
        %v1318 = vmul.f32 %v1124, %v1305
        %v1319 = vmul.f32 %v1125, %v1305
        %v1320 = vmul.f32 %v1126, %v1305
        %v1321 = vmul.f32 %v1127, %v1305
        %v1322 = vmul.f32 %v1128, %v1305
        %v1323 = vmul.f32 %v1129, %v1305
        %v1324 = vmul.f32 %v1130, %v1305
        %v1325 = vmul.f32 %v1131, %v1305
        %v1326 = vmul.f32 %v1132, %v1305
        %v1327 = vmul.f32 %v1133, %v1305
        %v1328 = vmul.f32 %v1134, %v1305
        %v1329 = vmul.f32 %v1135, %v1305
        %v1330 = vmul.f32 %v1136, %v1305
        %v1331 = vmul.f32 %v1137, %v1305
        %v1332 = vmul.f32 %v1138, %v1305
        %v1333 = vmul.f32 %v1139, %v1305
        %v1334 = vmul.f32 %v1140, %v1305
        %v1335 = vmul.f32 %v1141, %v1305
        %v1336 = vmul.f32 %v1142, %v1305
        %v1337 = vmul.f32 %v1143, %v1305
        %v1338 = vadd.f32 %v1270, %v1306
        %v1339 = vadd.f32 %v1271, %v1307
        %v1340 = vadd.f32 %v1272, %v1308
        %v1341 = vadd.f32 %v1273, %v1309
        %v1342 = vadd.f32 %v1274, %v1310
        %v1343 = vadd.f32 %v1275, %v1311
        %v1344 = vadd.f32 %v1276, %v1312
        %v1345 = vadd.f32 %v1277, %v1313
        %v1346 = vadd.f32 %v1278, %v1314
        %v1347 = vadd.f32 %v1279, %v1315
        %v1348 = vadd.f32 %v1280, %v1316
        %v1349 = vadd.f32 %v1281, %v1317
        %v1350 = vadd.f32 %v1282, %v1318
        %v1351 = vadd.f32 %v1283, %v1319
        %v1352 = vadd.f32 %v1284, %v1320
        %v1353 = vadd.f32 %v1285, %v1321
        %v1354 = vadd.f32 %v1286, %v1322
        %v1355 = vadd.f32 %v1287, %v1323
        %v1356 = vadd.f32 %v1288, %v1324
        %v1357 = vadd.f32 %v1289, %v1325
        %v1358 = vadd.f32 %v1290, %v1326
        %v1359 = vadd.f32 %v1291, %v1327
        %v1360 = vadd.f32 %v1292, %v1328
        %v1361 = vadd.f32 %v1293, %v1329
        %v1362 = vadd.f32 %v1294, %v1330
        %v1363 = vadd.f32 %v1295, %v1331
        %v1364 = vadd.f32 %v1296, %v1332
        %v1365 = vadd.f32 %v1297, %v1333
        %v1366 = vadd.f32 %v1298, %v1334
        %v1367 = vadd.f32 %v1299, %v1335
        %v1368 = vadd.f32 %v1300, %v1336
        %v1369 = vadd.f32 %v1301, %v1337
        %1370 = vst [vmem:[#allocation2] sm:$0xff] %v1338
        %1371 = vst [vmem:[#allocation2 + $0x8] sm:$0x7f] %v1339
        %1372 = vst [vmem:[#allocation2 + $0x10] sm:$0xff] %v1340
        %1373 = vst [vmem:[#allocation2 + $0x18] sm:$0x7f] %v1341
        %1374 = vst [vmem:[#allocation2 + $0x20] sm:$0xff] %v1342
        %1375 = vst [vmem:[#allocation2 + $0x28] sm:$0x7f] %v1343
        %1376 = vst [vmem:[#allocation2 + $0x30] sm:$0xff] %v1344
        %1377 = vst [vmem:[#allocation2 + $0x38] sm:$0x7f] %v1345
        %1378 = vst [vmem:[#allocation2 + $0x40] sm:$0xff] %v1346
        %1379 = vst [vmem:[#allocation2 + $0x48] sm:$0x7f] %v1347
        %1380 = vst [vmem:[#allocation2 + $0x50] sm:$0xff] %v1348
        %1381 = vst [vmem:[#allocation2 + $0x58] sm:$0x7f] %v1349
        %1382 = vst [vmem:[#allocation2 + $0x60] sm:$0xff] %v1350
        %1383 = vst [vmem:[#allocation2 + $0x68] sm:$0x7f] %v1351
        %1384 = vst [vmem:[#allocation2 + $0x70] sm:$0xff] %v1352
        %1385 = vst [vmem:[#allocation2 + $0x78] sm:$0x7f] %v1353
        %1386 = vst [vmem:[#allocation2 + $0x80] sm:$0xff] %v1354
        %1387 = vst [vmem:[#allocation2 + $0x88] sm:$0x7f] %v1355
        %1388 = vst [vmem:[#allocation2 + $0x90] sm:$0xff] %v1356
        %1389 = vst [vmem:[#allocation2 + $0x98] sm:$0x7f] %v1357
        %1390 = vst [vmem:[#allocation2 + $0xa0] sm:$0xff] %v1358
        %1391 = vst [vmem:[#allocation2 + $0xa8] sm:$0x7f] %v1359
        %1392 = vst [vmem:[#allocation2 + $0xb0] sm:$0xff] %v1360
        %1393 = vst [vmem:[#allocation2 + $0xb8] sm:$0x7f] %v1361
        %1394 = vst [vmem:[#allocation2 + $0xc0] sm:$0xff] %v1362
        %1395 = vst [vmem:[#allocation2 + $0xc8] sm:$0x7f] %v1363
        %1396 = vst [vmem:[#allocation2 + $0xd0] sm:$0xff] %v1364
        %1397 = vst [vmem:[#allocation2 + $0xd8] sm:$0x7f] %v1365
        %1398 = vst [vmem:[#allocation2 + $0xe0] sm:$0xff] %v1366
        %1399 = vst [vmem:[#allocation2 + $0xe8] sm:$0x7f] %v1367
        %1400 = vst [vmem:[#allocation2 + $0xf0] sm:$0xff] %v1368
        %1401 = vst [vmem:[#allocation2 + $0xf8] sm:$0x7f] %v1369
        %v1402 = vld [vmem:[#allocation6 + $0x8] sm:$0x1]
        %v1403 = vld [vmem:[#allocation2] sm:$0xff]
        %v1404 = vld [vmem:[#allocation2 + $0x8] sm:$0x7f]
        %v1405 = vld [vmem:[#allocation2 + $0x10] sm:$0xff]
        %v1406 = vld [vmem:[#allocation2 + $0x18] sm:$0x7f]
        %v1407 = vld [vmem:[#allocation2 + $0x20] sm:$0xff]
        %v1408 = vld [vmem:[#allocation2 + $0x28] sm:$0x7f]
        %v1409 = vld [vmem:[#allocation2 + $0x30] sm:$0xff]
        %v1410 = vld [vmem:[#allocation2 + $0x38] sm:$0x7f]
        %v1411 = vld [vmem:[#allocation2 + $0x40] sm:$0xff]
        %v1412 = vld [vmem:[#allocation2 + $0x48] sm:$0x7f]
        %v1413 = vld [vmem:[#allocation2 + $0x50] sm:$0xff]
        %v1414 = vld [vmem:[#allocation2 + $0x58] sm:$0x7f]
        %v1415 = vld [vmem:[#allocation2 + $0x60] sm:$0xff]
        %v1416 = vld [vmem:[#allocation2 + $0x68] sm:$0x7f]
        %v1417 = vld [vmem:[#allocation2 + $0x70] sm:$0xff]
        %v1418 = vld [vmem:[#allocation2 + $0x78] sm:$0x7f]
        %v1419 = vld [vmem:[#allocation2 + $0x80] sm:$0xff]
        %v1420 = vld [vmem:[#allocation2 + $0x88] sm:$0x7f]
        %v1421 = vld [vmem:[#allocation2 + $0x90] sm:$0xff]
        %v1422 = vld [vmem:[#allocation2 + $0x98] sm:$0x7f]
        %v1423 = vld [vmem:[#allocation2 + $0xa0] sm:$0xff]
        %v1424 = vld [vmem:[#allocation2 + $0xa8] sm:$0x7f]
        %v1425 = vld [vmem:[#allocation2 + $0xb0] sm:$0xff]
        %v1426 = vld [vmem:[#allocation2 + $0xb8] sm:$0x7f]
        %v1427 = vld [vmem:[#allocation2 + $0xc0] sm:$0xff]
        %v1428 = vld [vmem:[#allocation2 + $0xc8] sm:$0x7f]
        %v1429 = vld [vmem:[#allocation2 + $0xd0] sm:$0xff]
        %v1430 = vld [vmem:[#allocation2 + $0xd8] sm:$0x7f]
        %v1431 = vld [vmem:[#allocation2 + $0xe0] sm:$0xff]
        %v1432 = vld [vmem:[#allocation2 + $0xe8] sm:$0x7f]
        %v1433 = vlaneseq
        %v1434 = vshrl.u32 %v1433, 7
        %v1435 = vsub.s32 0, %v1434
        %v1436 = vrot.slane %v1402, %v1435
        %v1437 = vmul.f32 %v1114, %v1436
        %v1438 = vmul.f32 %v1115, %v1436
        %v1439 = vmul.f32 %v1116, %v1436
        %v1440 = vmul.f32 %v1117, %v1436
        %v1441 = vmul.f32 %v1118, %v1436
        %v1442 = vmul.f32 %v1119, %v1436
        %v1443 = vmul.f32 %v1120, %v1436
        %v1444 = vmul.f32 %v1121, %v1436
        %v1445 = vmul.f32 %v1122, %v1436
        %v1446 = vmul.f32 %v1123, %v1436
        %v1447 = vmul.f32 %v1124, %v1436
        %v1448 = vmul.f32 %v1125, %v1436
        %v1449 = vmul.f32 %v1126, %v1436
        %v1450 = vmul.f32 %v1127, %v1436
        %v1451 = vmul.f32 %v1128, %v1436
        %v1452 = vmul.f32 %v1129, %v1436
        %v1453 = vmul.f32 %v1130, %v1436
        %v1454 = vmul.f32 %v1131, %v1436
        %v1455 = vmul.f32 %v1132, %v1436
        %v1456 = vmul.f32 %v1133, %v1436
        %v1457 = vmul.f32 %v1134, %v1436
        %v1458 = vmul.f32 %v1135, %v1436
        %v1459 = vmul.f32 %v1136, %v1436
        %v1460 = vmul.f32 %v1137, %v1436
        %v1461 = vmul.f32 %v1138, %v1436
        %v1462 = vmul.f32 %v1139, %v1436
        %v1463 = vmul.f32 %v1140, %v1436
        %v1464 = vmul.f32 %v1141, %v1436
        %v1465 = vmul.f32 %v1142, %v1436
        %v1466 = vmul.f32 %v1143, %v1436
        %v1467 = vadd.f32 %v1403, %v1437
        %v1468 = vadd.f32 %v1404, %v1438
        %v1469 = vadd.f32 %v1405, %v1439
        %v1470 = vadd.f32 %v1406, %v1440
        %v1471 = vadd.f32 %v1407, %v1441
        %v1472 = vadd.f32 %v1408, %v1442
        %v1473 = vadd.f32 %v1409, %v1443
        %v1474 = vadd.f32 %v1410, %v1444
        %v1475 = vadd.f32 %v1411, %v1445
        %v1476 = vadd.f32 %v1412, %v1446
        %v1477 = vadd.f32 %v1413, %v1447
        %v1478 = vadd.f32 %v1414, %v1448
        %v1479 = vadd.f32 %v1415, %v1449
        %v1480 = vadd.f32 %v1416, %v1450
        %v1481 = vadd.f32 %v1417, %v1451
        %v1482 = vadd.f32 %v1418, %v1452
        %v1483 = vadd.f32 %v1419, %v1453
        %v1484 = vadd.f32 %v1420, %v1454
        %v1485 = vadd.f32 %v1421, %v1455
        %v1486 = vadd.f32 %v1422, %v1456
        %v1487 = vadd.f32 %v1423, %v1457
        %v1488 = vadd.f32 %v1424, %v1458
        %v1489 = vadd.f32 %v1425, %v1459
        %v1490 = vadd.f32 %v1426, %v1460
        %v1491 = vadd.f32 %v1427, %v1461
        %v1492 = vadd.f32 %v1428, %v1462
        %v1493 = vadd.f32 %v1429, %v1463
        %v1494 = vadd.f32 %v1430, %v1464
        %v1495 = vadd.f32 %v1431, %v1465
        %v1496 = vadd.f32 %v1432, %v1466
        %1497 = vst [vmem:[#allocation2] sm:$0xff] %v1467
        %1498 = vst [vmem:[#allocation2 + $0x8] sm:$0x7f] %v1468
        %1499 = vst [vmem:[#allocation2 + $0x10] sm:$0xff] %v1469
        %1500 = vst [vmem:[#allocation2 + $0x18] sm:$0x7f] %v1470
        %1501 = vst [vmem:[#allocation2 + $0x20] sm:$0xff] %v1471
        %1502 = vst [vmem:[#allocation2 + $0x28] sm:$0x7f] %v1472
        %1503 = vst [vmem:[#allocation2 + $0x30] sm:$0xff] %v1473
        %1504 = vst [vmem:[#allocation2 + $0x38] sm:$0x7f] %v1474
        %1505 = vst [vmem:[#allocation2 + $0x40] sm:$0xff] %v1475
        %1506 = vst [vmem:[#allocation2 + $0x48] sm:$0x7f] %v1476
        %1507 = vst [vmem:[#allocation2 + $0x50] sm:$0xff] %v1477
        %1508 = vst [vmem:[#allocation2 + $0x58] sm:$0x7f] %v1478
        %1509 = vst [vmem:[#allocation2 + $0x60] sm:$0xff] %v1479
        %1510 = vst [vmem:[#allocation2 + $0x68] sm:$0x7f] %v1480
        %1511 = vst [vmem:[#allocation2 + $0x70] sm:$0xff] %v1481
        %1512 = vst [vmem:[#allocation2 + $0x78] sm:$0x7f] %v1482
        %1513 = vst [vmem:[#allocation2 + $0x80] sm:$0xff] %v1483
        %1514 = vst [vmem:[#allocation2 + $0x88] sm:$0x7f] %v1484
        %1515 = vst [vmem:[#allocation2 + $0x90] sm:$0xff] %v1485
        %1516 = vst [vmem:[#allocation2 + $0x98] sm:$0x7f] %v1486
        %1517 = vst [vmem:[#allocation2 + $0xa0] sm:$0xff] %v1487
        %1518 = vst [vmem:[#allocation2 + $0xa8] sm:$0x7f] %v1488
        %1519 = vst [vmem:[#allocation2 + $0xb0] sm:$0xff] %v1489
        %1520 = vst [vmem:[#allocation2 + $0xb8] sm:$0x7f] %v1490
        %1521 = vst [vmem:[#allocation2 + $0xc0] sm:$0xff] %v1491
        %1522 = vst [vmem:[#allocation2 + $0xc8] sm:$0x7f] %v1492
        %1523 = vst [vmem:[#allocation2 + $0xd0] sm:$0xff] %v1493
        %1524 = vst [vmem:[#allocation2 + $0xd8] sm:$0x7f] %v1494
        %1525 = vst [vmem:[#allocation2 + $0xe0] sm:$0xff] %v1495
        %1526 = vst [vmem:[#allocation2 + $0xe8] sm:$0x7f] %v1496
        %v1527 = vld [vmem:[#allocation2] sm:$0xff]
        %v1528 = vld [vmem:[#allocation2 + $0x8] sm:$0xff]
        %v1529 = vld [vmem:[#allocation2 + $0x10] sm:$0xff]
        %v1530 = vld [vmem:[#allocation2 + $0x18] sm:$0xff]
        %v1531 = vld [vmem:[#allocation2 + $0x20] sm:$0xff]
        %v1532 = vld [vmem:[#allocation2 + $0x28] sm:$0xff]
        %v1533 = vld [vmem:[#allocation2 + $0x30] sm:$0xff]
        %v1534 = vld [vmem:[#allocation2 + $0x38] sm:$0xff]
        %v1535 = vld [vmem:[#allocation2 + $0x40] sm:$0xff]
        %v1536 = vld [vmem:[#allocation2 + $0x48] sm:$0xff]
        %v1537 = vld [vmem:[#allocation2 + $0x50] sm:$0xff]
        %v1538 = vld [vmem:[#allocation2 + $0x58] sm:$0xff]
        %v1539 = vld [vmem:[#allocation2 + $0x60] sm:$0xff]
        %v1540 = vld [vmem:[#allocation2 + $0x68] sm:$0xff]
        %v1541 = vld [vmem:[#allocation2 + $0x70] sm:$0xff]
        %v1542 = vld [vmem:[#allocation2 + $0x78] sm:$0xff]
        %v1543 = vld [vmem:[#allocation2 + $0x80] sm:$0xff]
        %v1544 = vld [vmem:[#allocation2 + $0x88] sm:$0xff]
        %v1545 = vld [vmem:[#allocation2 + $0x90] sm:$0xff]
        %v1546 = vld [vmem:[#allocation2 + $0x98] sm:$0xff]
        %v1547 = vld [vmem:[#allocation2 + $0xa0] sm:$0xff]
        %v1548 = vld [vmem:[#allocation2 + $0xa8] sm:$0xff]
        %v1549 = vld [vmem:[#allocation2 + $0xb0] sm:$0xff]
        %v1550 = vld [vmem:[#allocation2 + $0xb8] sm:$0xff]
        %v1551 = vld [vmem:[#allocation2 + $0xc0] sm:$0xff]
        %v1552 = vld [vmem:[#allocation2 + $0xc8] sm:$0xff]
        %v1553 = vld [vmem:[#allocation2 + $0xd0] sm:$0xff]
        %v1554 = vld [vmem:[#allocation2 + $0xd8] sm:$0xff]
        %v1555 = vld [vmem:[#allocation2 + $0xe0] sm:$0xff]
        %v1556 = vld [vmem:[#allocation2 + $0xe8] sm:$0xff]
        %v1557 = vld [vmem:[#allocation2 + $0xf0] sm:$0xff]
        %v1558 = vld [vmem:[#allocation2 + $0xf8] sm:$0xff]
        %1559 = vst [vmem:[%s238] sm:$0xff] %v1527
        %1560 = vst [vmem:[%s238 + $0x8] sm:$0xff] %v1528
        %1561 = vst [vmem:[%s238 + $0x10] sm:$0xff] %v1529
        %1562 = vst [vmem:[%s238 + $0x18] sm:$0xff] %v1530
        %1563 = vst [vmem:[%s238 + $0x20] sm:$0xff] %v1531
        %1564 = vst [vmem:[%s238 + $0x28] sm:$0xff] %v1532
        %1565 = vst [vmem:[%s238 + $0x30] sm:$0xff] %v1533
        %1566 = vst [vmem:[%s238 + $0x38] sm:$0xff] %v1534
        %1567 = vst [vmem:[%s238 + $0x40] sm:$0xff] %v1535
        %1568 = vst [vmem:[%s238 + $0x48] sm:$0xff] %v1536
        %1569 = vst [vmem:[%s238 + $0x50] sm:$0xff] %v1537
        %1570 = vst [vmem:[%s238 + $0x58] sm:$0xff] %v1538
        %1571 = vst [vmem:[%s238 + $0x60] sm:$0xff] %v1539
        %1572 = vst [vmem:[%s238 + $0x68] sm:$0xff] %v1540
        %1573 = vst [vmem:[%s238 + $0x70] sm:$0xff] %v1541
        %1574 = vst [vmem:[%s238 + $0x78] sm:$0xff] %v1542
        %1575 = vst [vmem:[%s238 + $0x80] sm:$0xff] %v1543
        %1576 = vst [vmem:[%s238 + $0x88] sm:$0xff] %v1544
        %1577 = vst [vmem:[%s238 + $0x90] sm:$0xff] %v1545
        %1578 = vst [vmem:[%s238 + $0x98] sm:$0xff] %v1546
        %1579 = vst [vmem:[%s238 + $0xa0] sm:$0xff] %v1547
        %1580 = vst [vmem:[%s238 + $0xa8] sm:$0xff] %v1548
        %1581 = vst [vmem:[%s238 + $0xb0] sm:$0xff] %v1549
        %1582 = vst [vmem:[%s238 + $0xb8] sm:$0xff] %v1550
        %1583 = vst [vmem:[%s238 + $0xc0] sm:$0xff] %v1551
        %1584 = vst [vmem:[%s238 + $0xc8] sm:$0xff] %v1552
        %1585 = vst [vmem:[%s238 + $0xd0] sm:$0xff] %v1553
        %1586 = vst [vmem:[%s238 + $0xd8] sm:$0xff] %v1554
        %1587 = vst [vmem:[%s238 + $0xe0] sm:$0xff] %v1555
        %1588 = vst [vmem:[%s238 + $0xe8] sm:$0xff] %v1556
        %1589 = vst [vmem:[%s238 + $0xf0] sm:$0xff] %v1557
        %1590 = vst [vmem:[%s238 + $0xf8] sm:$0xff] %v1558
        %s1591 = sand.u32 %s123, 1
        %s1592 = scalar_lea.sflag [#allocation5], %s1591
        %s1593 = sand.u32 %s123, 1
        %s1594 = smul.addr %s1593, 256
        %s1595 = scalar_lea.vmem [#allocation8], %s1594
        // Predicated region
        $region41: #{tpu_custom_call.1} parent=31 // pred_check
          %p1596 = pneg %p133
        $region42: #{tpu_custom_call.1} parent=31 // pred_check_branch
          %1598 = sbr.rel (%p1596) target = $region44
        $region43: #{tpu_custom_call.1} parent=31 // pred_region
          %s1600 = ssub.s32 4096, 4096
          %1601 = vsyncadd %s1592, %s1600
          %s1602 = smul.addr %s25, 32
          %s1603 = sadd.s32 %s26, %s1602
          %s1604 = smul.addr %s1603, 128
          %s1605 = scalar_lea.hbm %s3, %s1604
          %s1606 = sshll.u32 %s1595, 4
          %s1607 = int_to_ptr.vmem [resolvable:$true] %s1606
          %1612 = dma.vmem_to_hbm [thread:$0]  %s1607, 4096, %s1605, %s1592, 128, 128, 8
        $region44: #{tpu_custom_call.1} parent=31 // pred_fallthru
          _
      $region32: #{tpu_custom_call.1} parent=5 // pred_fallthru
        _
      %p1613 = scmp.le.s32.totalorder 2, %s16
      // Predicated region
      $region45: #{tpu_custom_call.1} parent=5 // pred_check
        %p1614 = pneg %p1613
      $region46: #{tpu_custom_call.1} parent=5 // pred_check_branch
        %1616 = sbr.rel (%p1614) target = $region48
      $region47: #{tpu_custom_call.1} parent=5 // pred_region
        %s1617 = ssub.s32 %s16, 2
        // Predicated region
        $region49: #{tpu_custom_call.1} parent=47 // pred_check
          %p1618 = pneg %p139
        $region50: #{tpu_custom_call.1} parent=47 // pred_check_branch
          %1620 = sbr.rel (%p1618) target = $region52
        $region51: #{tpu_custom_call.1} parent=47 // pred_region
          %s1621 = sand.u32 %s124, 1
          %s1622 = scalar_lea.sflag [#allocation5], %s1621
          %s1623 = sand.u32 %s124, 1
          %s1624 = smul.addr %s1623, 256
          %s1625 = scalar_lea.vmem [#allocation8], %s1624
          %1626 = dma.done %s1622, 4096
        $region52: #{tpu_custom_call.1} parent=47 // pred_fallthru
          _
      $region48: #{tpu_custom_call.1} parent=5 // pred_fallthru
        _
    $region6: #{tpu_custom_call.1} parent=1 // loop_footer
      %s20 = sadd.s32 1, %s16
    $region7: #{tpu_custom_call.1} parent=1 // loop_footer_branch
      %15 = sbr.rel target = $region3
    $region8: #{tpu_custom_call.1} parent=1 // loop_exit
      _
    %1627 = vsyncpa [#allocation4], 1
    %s1628 = scalar_lea.sflag [#allocation4], 1
    %1629 = vsyncpa %s1628, 1
    %1630 = vsyncpa [#allocation7], 1
    %1631 = vsyncpa [#allocation5], 1
    %s1632 = scalar_lea.sflag [#allocation5], 1
    %1633 = vsyncpa %s1632, 1

</llo_original>
